<compile_context>
chip_gen: v7x
topology: tpu7x:2x2x1
jax: 0.10.0
libtpu: 0.0.40
codegen_flags: <defaults>
</compile_context>

<pallas_src>
import functools

import numpy as np
import jax
import jax.numpy as jnp
from jax import lax
from jax.experimental import pallas as pl
from jax.experimental.pallas import tpu as pltpu


def _round_up(x, m):
    return (x + m - 1) // m * m


# ---------------------------------------------------------------------------
# Fused kernel: one grid step = one (batch-tile, time-chunk) pair.
#   1) curr_chunk = reshape(x_block) @ Win^T + (b_in + b_rec)   (one MXU call)
#   2) strictly-serial RSynaptic recurrence over the TT time steps.
# ---------------------------------------------------------------------------
def _lsm_kernel(x_ref, win_ref, b_ref, wlsm_ref, out_ref,
                curr_ref, spk_ref, syn_ref, mem_ref,
                *, alpha, beta, th, tt, unroll):
    c = pl.program_id(1)  # time-chunk index (innermost, "arbitrary")

    # Reset the recurrent state at the start of each batch tile's time sweep.
    @pl.when(c == 0)
    def _():
        spk_ref[...] = jnp.zeros_like(spk_ref)
        syn_ref[...] = jnp.zeros_like(syn_ref)
        mem_ref[...] = jnp.zeros_like(mem_ref)

    _, tb, n_pad = curr_ref.shape
    in_pad = x_ref.shape[-1]

    # Hoisted input projection for the whole chunk; both biases folded in.
    x2d = x_ref[...].reshape(tt * tb, in_pad)
    curr2d = jnp.dot(x2d, win_ref[...], preferred_element_type=jnp.float32)
    curr_ref[...] = (curr2d + b_ref[...]).reshape(tt, tb, n_pad)

    wlsm_t = wlsm_ref[...]  # (N_pad, N_pad), VMEM-resident across the grid
    # TODO(synk): a bf16 copy of Wlsm^T + bf16 spk would cut MXU passes ~3x,
    # but can flip spikes whose membrane lands near the threshold.

    def step(i, carry):
        spk_prev = spk_ref[...]
        rec = jnp.dot(spk_prev, wlsm_t, preferred_element_type=jnp.float32)
        syn_new = alpha * syn_ref[...] + curr_ref[i] + rec
        # reset == (mem_prev > th) == spk_prev: reuse it, no compare+cast.
        mem_new = beta * mem_ref[...] + syn_new - spk_prev * th
        spk_new = (mem_new > th).astype(jnp.float32)
        syn_ref[...] = syn_new
        mem_ref[...] = mem_new
        spk_ref[...] = spk_new
        out_ref[i] = spk_new.astype(out_ref.dtype)
        return carry

    lax.fori_loop(0, tt, step, 0, unroll=unroll)


def lsm_forward(x, win, b_in, wlsm, b_rec, *,
                alpha=0.9, beta=0.9, th=20.0,
                time_chunk=None, batch_tile=None,
                spk_dtype=jnp.bfloat16):
    """x: (T, B, in_sz); win: (N, in_sz); wlsm: (N, N); biases: (N,).

    Returns the spike record (T, B, N) as float32 (values exactly 0.0 / 1.0)."""
    T, B, in_sz = x.shape
    N = win.shape[0]
    f32 = jnp.float32

    out_itemsize = np.dtype(spk_dtype).itemsize
    sub = 32 // out_itemsize          # sublane multiple: f32->8, bf16->16
    B_pad = _round_up(B, sub)
    N_pad = _round_up(N, 128)
    in_pad = _round_up(in_sz, 8)

    if batch_tile is None:
        # Only split the batch (for v7x's two TensorCores) when each half is a
        # healthy MXU M dim; single-TC chips / small batches keep one tile.
        if B_pad % (2 * sub) == 0 and (B_pad // 2) >= 128:
            batch_tile = B_pad // 2
        else:
            batch_tile = B_pad
    TB = int(batch_tile)
    assert B_pad % TB == 0 and TB % sub == 0

    if time_chunk is None:
        # Target a few MiB of spike output + curr scratch per grid step:
        # large enough to amortize per-step overhead, small enough for VMEM.
        bytes_per_step = TB * N_pad * (out_itemsize + 4)
        time_chunk = (4 << 20) // max(bytes_per_step, 1)
        time_chunk = int(np.clip(time_chunk, 8, 64))
    TT = max(1, min(int(time_chunk), T))
    T_pad = _round_up(T, TT)
    unroll = TT if TT <= 16 else 8

    # ---- pad to lane/sublane-dense tiles (padding is semantically inert) ---
    x_p = jnp.zeros((T_pad, B_pad, in_pad), f32).at[:T, :B, :in_sz].set(
        x.astype(f32))
    win_t = jnp.zeros((in_pad, N_pad), f32).at[:in_sz, :N].set(
        win.astype(f32).T)
    wlsm_t = jnp.zeros((N_pad, N_pad), f32).at[:N, :N].set(wlsm.astype(f32).T)
    b_tot = jnp.zeros((1, N_pad), f32).at[0, :N].set(
        b_in.astype(f32) + b_rec.astype(f32))

    # ---- VMEM budget: 2x-buffered blocks + resident weights + scratch ------
    blk_x = TT * TB * in_pad * 4
    blk_out = TT * TB * N_pad * out_itemsize
    resident = (in_pad * N_pad + N_pad * N_pad + 8 * N_pad) * 4
    scratch = (TT * TB * N_pad + 3 * TB * N_pad) * 4
    needed = 2 * (blk_x + blk_out + resident) + scratch
    vmem_limit = int(min(max(needed + (4 << 20), 32 << 20), 128 << 20))

    kernel = functools.partial(
        _lsm_kernel,
        alpha=float(alpha), beta=float(beta), th=float(th),
        tt=TT, unroll=unroll)

    spk_rec = pl.pallas_call(
        kernel,
        out_shape=jax.ShapeDtypeStruct((T_pad, B_pad, N_pad), spk_dtype),
        grid_spec=pltpu.PrefetchScalarGridSpec(
            num_scalar_prefetch=0,
            grid=(B_pad // TB, T_pad // TT),
            in_specs=[
                pl.BlockSpec((TT, TB, in_pad), lambda b, c: (c, b, 0)),  # x chunk
                pl.BlockSpec((in_pad, N_pad), lambda b, c: (0, 0)),      # Win^T
                pl.BlockSpec((1, N_pad), lambda b, c: (0, 0)),           # b_in+b_rec
                pl.BlockSpec((N_pad, N_pad), lambda b, c: (0, 0)),       # Wlsm^T
            ],
            out_specs=pl.BlockSpec((TT, TB, N_pad), lambda b, c: (c, b, 0)),
            scratch_shapes=[
                pltpu.VMEM((TT, TB, N_pad), f32),  # curr chunk (projection)
                pltpu.VMEM((TB, N_pad), f32),      # spk state
                pltpu.VMEM((TB, N_pad), f32),      # syn state
                pltpu.VMEM((TB, N_pad), f32),      # mem state
            ],
        ),
        compiler_params=pltpu.CompilerParams(
            dimension_semantics=("parallel", "arbitrary"),
            vmem_limit_bytes=vmem_limit,
        ),
    )(x_p, win_t, b_tot, wlsm_t)

    return spk_rec[:T, :B, :N].astype(jnp.float32)


def lsm_forward_ref(x, win, b_in, wlsm, b_rec, *, alpha=0.9, beta=0.9, th=20.0):
    """Pure-JAX reference of the same recurrence (HIGHEST-precision matmuls so
    it is comparable to the in-kernel f32 MXU matmuls)."""
    T, B, _ = x.shape
    N = win.shape[0]
    zeros = jnp.zeros((B, N), jnp.float32)
    hi = lax.Precision.HIGHEST

    def step(carry, x_t):
        spk, syn, mem = carry
        curr = jnp.matmul(x_t, win.T, precision=hi) + b_in
        rec = jnp.matmul(spk, wlsm.T, precision=hi) + b_rec
        syn_new = alpha * syn + curr + rec
        reset = (mem > th).astype(jnp.float32)
        mem_new = beta * mem + syn_new - reset * th
        spk_new = (mem_new > th).astype(jnp.float32)
        return (spk_new, syn_new, mem_new), spk_new

    _, spk_rec = lax.scan(step, (zeros, zeros, zeros), x.astype(jnp.float32))
    return spk_rec


if __name__ == "__main__":
    # Small shapes consistent with the module's forward: x is (num_steps, batch, in_sz)
    T, B, in_sz, N = 8, 4, 16, 32
    alpha, beta, th = 0.9, 0.9, 20.0

    key = jax.random.PRNGKey(0)
    kx, kwin, kbin, kwlsm, kbrec = jax.random.split(key, 5)

    x = jax.random.normal(kx, (T, B, in_sz), jnp.float32) * 5.0
    win = jax.random.normal(kwin, (N, in_sz), jnp.float32)      # fc1.weight (Win)
    b_in = jax.random.normal(kbin, (N,), jnp.float32) * 0.1     # fc1.bias
    wlsm = jax.random.normal(kwlsm, (N, N), jnp.float32) * 0.5  # lsm.recurrent.weight (Wlsm)
    b_rec = jax.random.normal(kbrec, (N,), jnp.float32) * 0.1   # lsm.recurrent.bias

    out = lsm_forward(x, win, b_in, wlsm, b_rec, alpha=alpha, beta=beta, th=th)
    out = jax.block_until_ready(out)

    ref = lsm_forward_ref(x, win, b_in, wlsm, b_rec, alpha=alpha, beta=beta, th=th)
    assert out.shape == (T, B, N)
    assert jnp.allclose(out, ref, atol=1e-5), "Pallas LSM output mismatch vs JAX reference"

    print("KERNEL_OK")
</pallas_src>

<mosaic_0001>
module attributes {stable_mosaic.version = 11 : i64} {
  func.func @_lsm_kernel(%arg0: i32, %arg1: i32, %arg2: memref<8x16x16xf32, #tpu.memory_space<vmem>>, %arg3: memref<16x128xf32, #tpu.memory_space<vmem>>, %arg4: memref<1x128xf32, #tpu.memory_space<vmem>>, %arg5: memref<128x128xf32, #tpu.memory_space<vmem>>, %arg6: memref<8x16x128xbf16, #tpu.memory_space<vmem>>, %arg7: memref<8x16x128xf32, #tpu.memory_space<vmem>>, %arg8: memref<16x128xf32, #tpu.memory_space<vmem>>, %arg9: memref<16x128xf32, #tpu.memory_space<vmem>>, %arg10: memref<16x128xf32, #tpu.memory_space<vmem>>) attributes {dimension_semantics = [#tpu.dimension_semantics<parallel>, #tpu.dimension_semantics<arbitrary>], iteration_bounds = array<i64: 1, 1>, scalar_prefetch = 0 : i64, scratch_operands = 4 : i64, tpu.core_type = #tpu.core_type<tc>, window_params = [{transform_indices = @transform_0, window_bounds = array<i64: 8, 16, 16>}, {pipeline_mode = #tpu.pipeline_mode<synchronous>, transform_indices = @transform_1, window_bounds = array<i64: 16, 128>}, {pipeline_mode = #tpu.pipeline_mode<synchronous>, transform_indices = @transform_2, window_bounds = array<i64: 1, 128>}, {pipeline_mode = #tpu.pipeline_mode<synchronous>, transform_indices = @transform_3, window_bounds = array<i64: 128, 128>}, {transform_indices = @transform_4, window_bounds = array<i64: 8, 16, 128>}]} {
    %c0_i32 = arith.constant 0 : i32
    %0 = arith.cmpi eq, %arg1, %c0_i32 : i32
    %1 = arith.extui %0 : i1 to i32
    %c0_i32_0 = arith.constant 0 : i32
    %2 = arith.cmpi ne, %1, %c0_i32_0 : i32
    scf.if %2 {
      %cst_181 = arith.constant 0.000000e+00 : f32
      %245 = vector.broadcast %cst_181 : f32 to vector<16x128xf32>
      %c0_182 = arith.constant 0 : index
      %c0_183 = arith.constant 0 : index
      %246 = vector.load %arg8[%c0_182, %c0_183] : memref<16x128xf32, #tpu.memory_space<vmem>>, vector<16x128xf32>
      tpu.vector_store %arg8[%c0_182, %c0_183], %245 {strides = array<i32>} : memref<16x128xf32, #tpu.memory_space<vmem>>, vector<16x128xf32>,
      %cst_184 = arith.constant 0.000000e+00 : f32
      %247 = vector.broadcast %cst_184 : f32 to vector<16x128xf32>
      %c0_185 = arith.constant 0 : index
      %c0_186 = arith.constant 0 : index
      %248 = vector.load %arg9[%c0_185, %c0_186] : memref<16x128xf32, #tpu.memory_space<vmem>>, vector<16x128xf32>
      tpu.vector_store %arg9[%c0_185, %c0_186], %247 {strides = array<i32>} : memref<16x128xf32, #tpu.memory_space<vmem>>, vector<16x128xf32>,
      %cst_187 = arith.constant 0.000000e+00 : f32
      %249 = vector.broadcast %cst_187 : f32 to vector<16x128xf32>
      %c0_188 = arith.constant 0 : index
      %c0_189 = arith.constant 0 : index
      %250 = vector.load %arg10[%c0_188, %c0_189] : memref<16x128xf32, #tpu.memory_space<vmem>>, vector<16x128xf32>
      tpu.vector_store %arg10[%c0_188, %c0_189], %249 {strides = array<i32>} : memref<16x128xf32, #tpu.memory_space<vmem>>, vector<16x128xf32>,
    } else {
    }
    %c0 = arith.constant 0 : index
    %c0_1 = arith.constant 0 : index
    %c0_2 = arith.constant 0 : index
    %3 = vector.load %arg2[%c0, %c0_1, %c0_2] : memref<8x16x16xf32, #tpu.memory_space<vmem>>, vector<8x16x16xf32>
    %4 = vector.shape_cast %3 : vector<8x16x16xf32> to vector<128x16xf32>
    %c0_3 = arith.constant 0 : index
    %c0_4 = arith.constant 0 : index
    %5 = vector.load %arg3[%c0_3, %c0_4] : memref<16x128xf32, #tpu.memory_space<vmem>>, vector<16x128xf32>
    %cst = arith.constant dense<0.000000e+00> : vector<128x128xf32>
    %6 = tpu.matmul %4, %5, %cst {dimension_numbers = #tpu.dot_dimension_numbers<[1], [0], [0], [1], [0, 0, 1, 1], [], []>} : vector<128x16xf32>, vector<16x128xf32>, vector<128x128xf32> -> vector<128x128xf32>
    %c0_5 = arith.constant 0 : index
    %c0_6 = arith.constant 0 : index
    %7 = vector.load %arg4[%c0_5, %c0_6] : memref<1x128xf32, #tpu.memory_space<vmem>>, vector<1x128xf32>
    %8 = vector.broadcast %7 : vector<1x128xf32> to vector<128x128xf32>
    %9 = arith.addf %6, %8 : vector<128x128xf32>
    %10 = vector.shape_cast %9 : vector<128x128xf32> to vector<8x16x128xf32>
    %c0_7 = arith.constant 0 : index
    %c0_8 = arith.constant 0 : index
    %c0_9 = arith.constant 0 : index
    %11 = vector.load %arg7[%c0_7, %c0_8, %c0_9] : memref<8x16x128xf32, #tpu.memory_space<vmem>>, vector<8x16x128xf32>
    tpu.vector_store %arg7[%c0_7, %c0_8, %c0_9], %10 {strides = array<i32>} : memref<8x16x128xf32, #tpu.memory_space<vmem>>, vector<8x16x128xf32>,
    %c0_10 = arith.constant 0 : index
    %c0_11 = arith.constant 0 : index
    %12 = vector.load %arg5[%c0_10, %c0_11] : memref<128x128xf32, #tpu.memory_space<vmem>>, vector<128x128xf32>
    %c0_i32_12 = arith.constant 0 : i32
    %c0_13 = arith.constant 0 : index
    %c0_14 = arith.constant 0 : index
    %13 = vector.load %arg8[%c0_13, %c0_14] : memref<16x128xf32, #tpu.memory_space<vmem>>, vector<16x128xf32>
    %cst_15 = arith.constant dense<0.000000e+00> : vector<16x128xf32>
    %14 = tpu.matmul %13, %12, %cst_15 {dimension_numbers = #tpu.dot_dimension_numbers<[1], [0], [0], [1], [0, 0, 1, 1], [], []>} : vector<16x128xf32>, vector<128x128xf32>, vector<16x128xf32> -> vector<16x128xf32>
    %c0_16 = arith.constant 0 : index
    %c0_17 = arith.constant 0 : index
    %15 = vector.load %arg9[%c0_16, %c0_17] : memref<16x128xf32, #tpu.memory_space<vmem>>, vector<16x128xf32>
    %cst_18 = arith.constant 0.899999976 : f32
    %16 = vector.broadcast %cst_18 : f32 to vector<16x128xf32>
    %17 = arith.mulf %16, %15 : vector<16x128xf32>
    %18 = arith.index_cast %c0_i32_12 : i32 to index
    %c0_19 = arith.constant 0 : index
    %c0_20 = arith.constant 0 : index
    %19 = vector.load %arg7[%18, %c0_19, %c0_20] : memref<8x16x128xf32, #tpu.memory_space<vmem>>, vector<1x16x128xf32>
    %20 = vector.shape_cast %19 : vector<1x16x128xf32> to vector<16x128xf32>
    %21 = arith.addf %17, %20 : vector<16x128xf32>
    %22 = arith.addf %21, %14 : vector<16x128xf32>
    %c0_21 = arith.constant 0 : index
    %c0_22 = arith.constant 0 : index
    %23 = vector.load %arg10[%c0_21, %c0_22] : memref<16x128xf32, #tpu.memory_space<vmem>>, vector<16x128xf32>
    %cst_23 = arith.constant 0.899999976 : f32
    %24 = vector.broadcast %cst_23 : f32 to vector<16x128xf32>
    %25 = arith.mulf %24, %23 : vector<16x128xf32>
    %26 = arith.addf %25, %22 : vector<16x128xf32>
    %cst_24 = arith.constant 2.000000e+01 : f32
    %27 = vector.broadcast %cst_24 : f32 to vector<16x128xf32>
    %28 = arith.mulf %13, %27 : vector<16x128xf32>
    %29 = arith.subf %26, %28 : vector<16x128xf32>
    %cst_25 = arith.constant 2.000000e+01 : f32
    %30 = vector.broadcast %cst_25 : f32 to vector<16x128xf32>
    %31 = arith.cmpf ogt, %29, %30 : vector<16x128xf32>
    %32 = arith.extui %31 : vector<16x128xi1> to vector<16x128xi32>
    %33 = arith.sitofp %32 : vector<16x128xi32> to vector<16x128xf32>
    %c0_26 = arith.constant 0 : index
    %c0_27 = arith.constant 0 : index
    %34 = vector.load %arg9[%c0_26, %c0_27] : memref<16x128xf32, #tpu.memory_space<vmem>>, vector<16x128xf32>
    tpu.vector_store %arg9[%c0_26, %c0_27], %22 {strides = array<i32>} : memref<16x128xf32, #tpu.memory_space<vmem>>, vector<16x128xf32>,
    %c0_28 = arith.constant 0 : index
    %c0_29 = arith.constant 0 : index
    %35 = vector.load %arg10[%c0_28, %c0_29] : memref<16x128xf32, #tpu.memory_space<vmem>>, vector<16x128xf32>
    tpu.vector_store %arg10[%c0_28, %c0_29], %29 {strides = array<i32>} : memref<16x128xf32, #tpu.memory_space<vmem>>, vector<16x128xf32>,
    %c0_30 = arith.constant 0 : index
    %c0_31 = arith.constant 0 : index
    %36 = vector.load %arg8[%c0_30, %c0_31] : memref<16x128xf32, #tpu.memory_space<vmem>>, vector<16x128xf32>
    tpu.vector_store %arg8[%c0_30, %c0_31], %33 {strides = array<i32>} : memref<16x128xf32, #tpu.memory_space<vmem>>, vector<16x128xf32>,
    %37 = arith.truncf %33 : vector<16x128xf32> to vector<16x128xbf16>
    %38 = arith.index_cast %c0_i32_12 : i32 to index
    %c0_32 = arith.constant 0 : index
    %c0_33 = arith.constant 0 : index
    %39 = vector.load %arg6[%38, %c0_32, %c0_33] : memref<8x16x128xbf16, #tpu.memory_space<vmem>>, vector<1x16x128xbf16>
    %40 = vector.shape_cast %39 : vector<1x16x128xbf16> to vector<16x128xbf16>
    %41 = vector.shape_cast %37 : vector<16x128xbf16> to vector<1x16x128xbf16>
    tpu.vector_store %arg6[%38, %c0_32, %c0_33], %41 {strides = array<i32>} : memref<8x16x128xbf16, #tpu.memory_space<vmem>>, vector<1x16x128xbf16>,
    %c1_i32 = arith.constant 1 : i32
    %c0_34 = arith.constant 0 : index
    %c0_35 = arith.constant 0 : index
    %42 = vector.load %arg8[%c0_34, %c0_35] : memref<16x128xf32, #tpu.memory_space<vmem>>, vector<16x128xf32>
    %cst_36 = arith.constant dense<0.000000e+00> : vector<16x128xf32>
    %43 = tpu.matmul %42, %12, %cst_36 {dimension_numbers = #tpu.dot_dimension_numbers<[1], [0], [0], [1], [0, 0, 1, 1], [], []>} : vector<16x128xf32>, vector<128x128xf32>, vector<16x128xf32> -> vector<16x128xf32>
    %c0_37 = arith.constant 0 : index
    %c0_38 = arith.constant 0 : index
    %44 = vector.load %arg9[%c0_37, %c0_38] : memref<16x128xf32, #tpu.memory_space<vmem>>, vector<16x128xf32>
    %cst_39 = arith.constant 0.899999976 : f32
    %45 = vector.broadcast %cst_39 : f32 to vector<16x128xf32>
    %46 = arith.mulf %45, %44 : vector<16x128xf32>
    %47 = arith.index_cast %c1_i32 : i32 to index
    %c0_40 = arith.constant 0 : index
    %c0_41 = arith.constant 0 : index
    %48 = vector.load %arg7[%47, %c0_40, %c0_41] : memref<8x16x128xf32, #tpu.memory_space<vmem>>, vector<1x16x128xf32>
    %49 = vector.shape_cast %48 : vector<1x16x128xf32> to vector<16x128xf32>
    %50 = arith.addf %46, %49 : vector<16x128xf32>
    %51 = arith.addf %50, %43 : vector<16x128xf32>
    %c0_42 = arith.constant 0 : index
    %c0_43 = arith.constant 0 : index
    %52 = vector.load %arg10[%c0_42, %c0_43] : memref<16x128xf32, #tpu.memory_space<vmem>>, vector<16x128xf32>
    %cst_44 = arith.constant 0.899999976 : f32
    %53 = vector.broadcast %cst_44 : f32 to vector<16x128xf32>
    %54 = arith.mulf %53, %52 : vector<16x128xf32>
    %55 = arith.addf %54, %51 : vector<16x128xf32>
    %cst_45 = arith.constant 2.000000e+01 : f32
    %56 = vector.broadcast %cst_45 : f32 to vector<16x128xf32>
    %57 = arith.mulf %42, %56 : vector<16x128xf32>
    %58 = arith.subf %55, %57 : vector<16x128xf32>
    %cst_46 = arith.constant 2.000000e+01 : f32
    %59 = vector.broadcast %cst_46 : f32 to vector<16x128xf32>
    %60 = arith.cmpf ogt, %58, %59 : vector<16x128xf32>
    %61 = arith.extui %60 : vector<16x128xi1> to vector<16x128xi32>
    %62 = arith.sitofp %61 : vector<16x128xi32> to vector<16x128xf32>
    %c0_47 = arith.constant 0 : index
    %c0_48 = arith.constant 0 : index
    %63 = vector.load %arg9[%c0_47, %c0_48] : memref<16x128xf32, #tpu.memory_space<vmem>>, vector<16x128xf32>
    tpu.vector_store %arg9[%c0_47, %c0_48], %51 {strides = array<i32>} : memref<16x128xf32, #tpu.memory_space<vmem>>, vector<16x128xf32>,
    %c0_49 = arith.constant 0 : index
    %c0_50 = arith.constant 0 : index
    %64 = vector.load %arg10[%c0_49, %c0_50] : memref<16x128xf32, #tpu.memory_space<vmem>>, vector<16x128xf32>
    tpu.vector_store %arg10[%c0_49, %c0_50], %58 {strides = array<i32>} : memref<16x128xf32, #tpu.memory_space<vmem>>, vector<16x128xf32>,
    %c0_51 = arith.constant 0 : index
    %c0_52 = arith.constant 0 : index
    %65 = vector.load %arg8[%c0_51, %c0_52] : memref<16x128xf32, #tpu.memory_space<vmem>>, vector<16x128xf32>
    tpu.vector_store %arg8[%c0_51, %c0_52], %62 {strides = array<i32>} : memref<16x128xf32, #tpu.memory_space<vmem>>, vector<16x128xf32>,
    %66 = arith.truncf %62 : vector<16x128xf32> to vector<16x128xbf16>
    %67 = arith.index_cast %c1_i32 : i32 to index
    %c0_53 = arith.constant 0 : index
    %c0_54 = arith.constant 0 : index
    %68 = vector.load %arg6[%67, %c0_53, %c0_54] : memref<8x16x128xbf16, #tpu.memory_space<vmem>>, vector<1x16x128xbf16>
    %69 = vector.shape_cast %68 : vector<1x16x128xbf16> to vector<16x128xbf16>
    %70 = vector.shape_cast %66 : vector<16x128xbf16> to vector<1x16x128xbf16>
    tpu.vector_store %arg6[%67, %c0_53, %c0_54], %70 {strides = array<i32>} : memref<8x16x128xbf16, #tpu.memory_space<vmem>>, vector<1x16x128xbf16>,
    %c2_i32 = arith.constant 2 : i32
    %c0_55 = arith.constant 0 : index
    %c0_56 = arith.constant 0 : index
    %71 = vector.load %arg8[%c0_55, %c0_56] : memref<16x128xf32, #tpu.memory_space<vmem>>, vector<16x128xf32>
    %cst_57 = arith.constant dense<0.000000e+00> : vector<16x128xf32>
    %72 = tpu.matmul %71, %12, %cst_57 {dimension_numbers = #tpu.dot_dimension_numbers<[1], [0], [0], [1], [0, 0, 1, 1], [], []>} : vector<16x128xf32>, vector<128x128xf32>, vector<16x128xf32> -> vector<16x128xf32>
    %c0_58 = arith.constant 0 : index
    %c0_59 = arith.constant 0 : index
    %73 = vector.load %arg9[%c0_58, %c0_59] : memref<16x128xf32, #tpu.memory_space<vmem>>, vector<16x128xf32>
    %cst_60 = arith.constant 0.899999976 : f32
    %74 = vector.broadcast %cst_60 : f32 to vector<16x128xf32>
    %75 = arith.mulf %74, %73 : vector<16x128xf32>
    %76 = arith.index_cast %c2_i32 : i32 to index
    %c0_61 = arith.constant 0 : index
    %c0_62 = arith.constant 0 : index
    %77 = vector.load %arg7[%76, %c0_61, %c0_62] : memref<8x16x128xf32, #tpu.memory_space<vmem>>, vector<1x16x128xf32>
    %78 = vector.shape_cast %77 : vector<1x16x128xf32> to vector<16x128xf32>
    %79 = arith.addf %75, %78 : vector<16x128xf32>
    %80 = arith.addf %79, %72 : vector<16x128xf32>
    %c0_63 = arith.constant 0 : index
    %c0_64 = arith.constant 0 : index
    %81 = vector.load %arg10[%c0_63, %c0_64] : memref<16x128xf32, #tpu.memory_space<vmem>>, vector<16x128xf32>
    %cst_65 = arith.constant 0.899999976 : f32
    %82 = vector.broadcast %cst_65 : f32 to vector<16x128xf32>
    %83 = arith.mulf %82, %81 : vector<16x128xf32>
    %84 = arith.addf %83, %80 : vector<16x128xf32>
    %cst_66 = arith.constant 2.000000e+01 : f32
    %85 = vector.broadcast %cst_66 : f32 to vector<16x128xf32>
    %86 = arith.mulf %71, %85 : vector<16x128xf32>
    %87 = arith.subf %84, %86 : vector<16x128xf32>
    %cst_67 = arith.constant 2.000000e+01 : f32
    %88 = vector.broadcast %cst_67 : f32 to vector<16x128xf32>
    %89 = arith.cmpf ogt, %87, %88 : vector<16x128xf32>
    %90 = arith.extui %89 : vector<16x128xi1> to vector<16x128xi32>
    %91 = arith.sitofp %90 : vector<16x128xi32> to vector<16x128xf32>
    %c0_68 = arith.constant 0 : index
    %c0_69 = arith.constant 0 : index
    %92 = vector.load %arg9[%c0_68, %c0_69] : memref<16x128xf32, #tpu.memory_space<vmem>>, vector<16x128xf32>
    tpu.vector_store %arg9[%c0_68, %c0_69], %80 {strides = array<i32>} : memref<16x128xf32, #tpu.memory_space<vmem>>, vector<16x128xf32>,
    %c0_70 = arith.constant 0 : index
    %c0_71 = arith.constant 0 : index
    %93 = vector.load %arg10[%c0_70, %c0_71] : memref<16x128xf32, #tpu.memory_space<vmem>>, vector<16x128xf32>
    tpu.vector_store %arg10[%c0_70, %c0_71], %87 {strides = array<i32>} : memref<16x128xf32, #tpu.memory_space<vmem>>, vector<16x128xf32>,
    %c0_72 = arith.constant 0 : index
    %c0_73 = arith.constant 0 : index
    %94 = vector.load %arg8[%c0_72, %c0_73] : memref<16x128xf32, #tpu.memory_space<vmem>>, vector<16x128xf32>
    tpu.vector_store %arg8[%c0_72, %c0_73], %91 {strides = array<i32>} : memref<16x128xf32, #tpu.memory_space<vmem>>, vector<16x128xf32>,
    %95 = arith.truncf %91 : vector<16x128xf32> to vector<16x128xbf16>
    %96 = arith.index_cast %c2_i32 : i32 to index
    %c0_74 = arith.constant 0 : index
    %c0_75 = arith.constant 0 : index
    %97 = vector.load %arg6[%96, %c0_74, %c0_75] : memref<8x16x128xbf16, #tpu.memory_space<vmem>>, vector<1x16x128xbf16>
    %98 = vector.shape_cast %97 : vector<1x16x128xbf16> to vector<16x128xbf16>
    %99 = vector.shape_cast %95 : vector<16x128xbf16> to vector<1x16x128xbf16>
    tpu.vector_store %arg6[%96, %c0_74, %c0_75], %99 {strides = array<i32>} : memref<8x16x128xbf16, #tpu.memory_space<vmem>>, vector<1x16x128xbf16>,
    %c3_i32 = arith.constant 3 : i32
    %c0_76 = arith.constant 0 : index
    %c0_77 = arith.constant 0 : index
    %100 = vector.load %arg8[%c0_76, %c0_77] : memref<16x128xf32, #tpu.memory_space<vmem>>, vector<16x128xf32>
    %cst_78 = arith.constant dense<0.000000e+00> : vector<16x128xf32>
    %101 = tpu.matmul %100, %12, %cst_78 {dimension_numbers = #tpu.dot_dimension_numbers<[1], [0], [0], [1], [0, 0, 1, 1], [], []>} : vector<16x128xf32>, vector<128x128xf32>, vector<16x128xf32> -> vector<16x128xf32>
    %c0_79 = arith.constant 0 : index
    %c0_80 = arith.constant 0 : index
    %102 = vector.load %arg9[%c0_79, %c0_80] : memref<16x128xf32, #tpu.memory_space<vmem>>, vector<16x128xf32>
    %cst_81 = arith.constant 0.899999976 : f32
    %103 = vector.broadcast %cst_81 : f32 to vector<16x128xf32>
    %104 = arith.mulf %103, %102 : vector<16x128xf32>
    %105 = arith.index_cast %c3_i32 : i32 to index
    %c0_82 = arith.constant 0 : index
    %c0_83 = arith.constant 0 : index
    %106 = vector.load %arg7[%105, %c0_82, %c0_83] : memref<8x16x128xf32, #tpu.memory_space<vmem>>, vector<1x16x128xf32>
    %107 = vector.shape_cast %106 : vector<1x16x128xf32> to vector<16x128xf32>
    %108 = arith.addf %104, %107 : vector<16x128xf32>
    %109 = arith.addf %108, %101 : vector<16x128xf32>
    %c0_84 = arith.constant 0 : index
    %c0_85 = arith.constant 0 : index
    %110 = vector.load %arg10[%c0_84, %c0_85] : memref<16x128xf32, #tpu.memory_space<vmem>>, vector<16x128xf32>
    %cst_86 = arith.constant 0.899999976 : f32
    %111 = vector.broadcast %cst_86 : f32 to vector<16x128xf32>
    %112 = arith.mulf %111, %110 : vector<16x128xf32>
    %113 = arith.addf %112, %109 : vector<16x128xf32>
    %cst_87 = arith.constant 2.000000e+01 : f32
    %114 = vector.broadcast %cst_87 : f32 to vector<16x128xf32>
    %115 = arith.mulf %100, %114 : vector<16x128xf32>
    %116 = arith.subf %113, %115 : vector<16x128xf32>
    %cst_88 = arith.constant 2.000000e+01 : f32
    %117 = vector.broadcast %cst_88 : f32 to vector<16x128xf32>
    %118 = arith.cmpf ogt, %116, %117 : vector<16x128xf32>
    %119 = arith.extui %118 : vector<16x128xi1> to vector<16x128xi32>
    %120 = arith.sitofp %119 : vector<16x128xi32> to vector<16x128xf32>
    %c0_89 = arith.constant 0 : index
    %c0_90 = arith.constant 0 : index
    %121 = vector.load %arg9[%c0_89, %c0_90] : memref<16x128xf32, #tpu.memory_space<vmem>>, vector<16x128xf32>
    tpu.vector_store %arg9[%c0_89, %c0_90], %109 {strides = array<i32>} : memref<16x128xf32, #tpu.memory_space<vmem>>, vector<16x128xf32>,
    %c0_91 = arith.constant 0 : index
    %c0_92 = arith.constant 0 : index
    %122 = vector.load %arg10[%c0_91, %c0_92] : memref<16x128xf32, #tpu.memory_space<vmem>>, vector<16x128xf32>
    tpu.vector_store %arg10[%c0_91, %c0_92], %116 {strides = array<i32>} : memref<16x128xf32, #tpu.memory_space<vmem>>, vector<16x128xf32>,
    %c0_93 = arith.constant 0 : index
    %c0_94 = arith.constant 0 : index
    %123 = vector.load %arg8[%c0_93, %c0_94] : memref<16x128xf32, #tpu.memory_space<vmem>>, vector<16x128xf32>
    tpu.vector_store %arg8[%c0_93, %c0_94], %120 {strides = array<i32>} : memref<16x128xf32, #tpu.memory_space<vmem>>, vector<16x128xf32>,
    %124 = arith.truncf %120 : vector<16x128xf32> to vector<16x128xbf16>
    %125 = arith.index_cast %c3_i32 : i32 to index
    %c0_95 = arith.constant 0 : index
    %c0_96 = arith.constant 0 : index
    %126 = vector.load %arg6[%125, %c0_95, %c0_96] : memref<8x16x128xbf16, #tpu.memory_space<vmem>>, vector<1x16x128xbf16>
    %127 = vector.shape_cast %126 : vector<1x16x128xbf16> to vector<16x128xbf16>
    %128 = vector.shape_cast %124 : vector<16x128xbf16> to vector<1x16x128xbf16>
    tpu.vector_store %arg6[%125, %c0_95, %c0_96], %128 {strides = array<i32>} : memref<8x16x128xbf16, #tpu.memory_space<vmem>>, vector<1x16x128xbf16>,
    %c4_i32 = arith.constant 4 : i32
    %c0_97 = arith.constant 0 : index
    %c0_98 = arith.constant 0 : index
    %129 = vector.load %arg8[%c0_97, %c0_98] : memref<16x128xf32, #tpu.memory_space<vmem>>, vector<16x128xf32>
    %cst_99 = arith.constant dense<0.000000e+00> : vector<16x128xf32>
    %130 = tpu.matmul %129, %12, %cst_99 {dimension_numbers = #tpu.dot_dimension_numbers<[1], [0], [0], [1], [0, 0, 1, 1], [], []>} : vector<16x128xf32>, vector<128x128xf32>, vector<16x128xf32> -> vector<16x128xf32>
    %c0_100 = arith.constant 0 : index
    %c0_101 = arith.constant 0 : index
    %131 = vector.load %arg9[%c0_100, %c0_101] : memref<16x128xf32, #tpu.memory_space<vmem>>, vector<16x128xf32>
    %cst_102 = arith.constant 0.899999976 : f32
    %132 = vector.broadcast %cst_102 : f32 to vector<16x128xf32>
    %133 = arith.mulf %132, %131 : vector<16x128xf32>
    %134 = arith.index_cast %c4_i32 : i32 to index
    %c0_103 = arith.constant 0 : index
    %c0_104 = arith.constant 0 : index
    %135 = vector.load %arg7[%134, %c0_103, %c0_104] : memref<8x16x128xf32, #tpu.memory_space<vmem>>, vector<1x16x128xf32>
    %136 = vector.shape_cast %135 : vector<1x16x128xf32> to vector<16x128xf32>
    %137 = arith.addf %133, %136 : vector<16x128xf32>
    %138 = arith.addf %137, %130 : vector<16x128xf32>
    %c0_105 = arith.constant 0 : index
    %c0_106 = arith.constant 0 : index
    %139 = vector.load %arg10[%c0_105, %c0_106] : memref<16x128xf32, #tpu.memory_space<vmem>>, vector<16x128xf32>
    %cst_107 = arith.constant 0.899999976 : f32
    %140 = vector.broadcast %cst_107 : f32 to vector<16x128xf32>
    %141 = arith.mulf %140, %139 : vector<16x128xf32>
    %142 = arith.addf %141, %138 : vector<16x128xf32>
    %cst_108 = arith.constant 2.000000e+01 : f32
    %143 = vector.broadcast %cst_108 : f32 to vector<16x128xf32>
    %144 = arith.mulf %129, %143 : vector<16x128xf32>
    %145 = arith.subf %142, %144 : vector<16x128xf32>
    %cst_109 = arith.constant 2.000000e+01 : f32
    %146 = vector.broadcast %cst_109 : f32 to vector<16x128xf32>
    %147 = arith.cmpf ogt, %145, %146 : vector<16x128xf32>
    %148 = arith.extui %147 : vector<16x128xi1> to vector<16x128xi32>
    %149 = arith.sitofp %148 : vector<16x128xi32> to vector<16x128xf32>
    %c0_110 = arith.constant 0 : index
    %c0_111 = arith.constant 0 : index
    %150 = vector.load %arg9[%c0_110, %c0_111] : memref<16x128xf32, #tpu.memory_space<vmem>>, vector<16x128xf32>
    tpu.vector_store %arg9[%c0_110, %c0_111], %138 {strides = array<i32>} : memref<16x128xf32, #tpu.memory_space<vmem>>, vector<16x128xf32>,
    %c0_112 = arith.constant 0 : index
    %c0_113 = arith.constant 0 : index
    %151 = vector.load %arg10[%c0_112, %c0_113] : memref<16x128xf32, #tpu.memory_space<vmem>>, vector<16x128xf32>
    tpu.vector_store %arg10[%c0_112, %c0_113], %145 {strides = array<i32>} : memref<16x128xf32, #tpu.memory_space<vmem>>, vector<16x128xf32>,
    %c0_114 = arith.constant 0 : index
    %c0_115 = arith.constant 0 : index
    %152 = vector.load %arg8[%c0_114, %c0_115] : memref<16x128xf32, #tpu.memory_space<vmem>>, vector<16x128xf32>
    tpu.vector_store %arg8[%c0_114, %c0_115], %149 {strides = array<i32>} : memref<16x128xf32, #tpu.memory_space<vmem>>, vector<16x128xf32>,
    %153 = arith.truncf %149 : vector<16x128xf32> to vector<16x128xbf16>
    %154 = arith.index_cast %c4_i32 : i32 to index
    %c0_116 = arith.constant 0 : index
    %c0_117 = arith.constant 0 : index
    %155 = vector.load %arg6[%154, %c0_116, %c0_117] : memref<8x16x128xbf16, #tpu.memory_space<vmem>>, vector<1x16x128xbf16>
    %156 = vector.shape_cast %155 : vector<1x16x128xbf16> to vector<16x128xbf16>
    %157 = vector.shape_cast %153 : vector<16x128xbf16> to vector<1x16x128xbf16>
    tpu.vector_store %arg6[%154, %c0_116, %c0_117], %157 {strides = array<i32>} : memref<8x16x128xbf16, #tpu.memory_space<vmem>>, vector<1x16x128xbf16>,
    %c5_i32 = arith.constant 5 : i32
    %c0_118 = arith.constant 0 : index
    %c0_119 = arith.constant 0 : index
    %158 = vector.load %arg8[%c0_118, %c0_119] : memref<16x128xf32, #tpu.memory_space<vmem>>, vector<16x128xf32>
    %cst_120 = arith.constant dense<0.000000e+00> : vector<16x128xf32>
    %159 = tpu.matmul %158, %12, %cst_120 {dimension_numbers = #tpu.dot_dimension_numbers<[1], [0], [0], [1], [0, 0, 1, 1], [], []>} : vector<16x128xf32>, vector<128x128xf32>, vector<16x128xf32> -> vector<16x128xf32>
    %c0_121 = arith.constant 0 : index
    %c0_122 = arith.constant 0 : index
    %160 = vector.load %arg9[%c0_121, %c0_122] : memref<16x128xf32, #tpu.memory_space<vmem>>, vector<16x128xf32>
    %cst_123 = arith.constant 0.899999976 : f32
    %161 = vector.broadcast %cst_123 : f32 to vector<16x128xf32>
    %162 = arith.mulf %161, %160 : vector<16x128xf32>
    %163 = arith.index_cast %c5_i32 : i32 to index
    %c0_124 = arith.constant 0 : index
    %c0_125 = arith.constant 0 : index
    %164 = vector.load %arg7[%163, %c0_124, %c0_125] : memref<8x16x128xf32, #tpu.memory_space<vmem>>, vector<1x16x128xf32>
    %165 = vector.shape_cast %164 : vector<1x16x128xf32> to vector<16x128xf32>
    %166 = arith.addf %162, %165 : vector<16x128xf32>
    %167 = arith.addf %166, %159 : vector<16x128xf32>
    %c0_126 = arith.constant 0 : index
    %c0_127 = arith.constant 0 : index
    %168 = vector.load %arg10[%c0_126, %c0_127] : memref<16x128xf32, #tpu.memory_space<vmem>>, vector<16x128xf32>
    %cst_128 = arith.constant 0.899999976 : f32
    %169 = vector.broadcast %cst_128 : f32 to vector<16x128xf32>
    %170 = arith.mulf %169, %168 : vector<16x128xf32>
    %171 = arith.addf %170, %167 : vector<16x128xf32>
    %cst_129 = arith.constant 2.000000e+01 : f32
    %172 = vector.broadcast %cst_129 : f32 to vector<16x128xf32>
    %173 = arith.mulf %158, %172 : vector<16x128xf32>
    %174 = arith.subf %171, %173 : vector<16x128xf32>
    %cst_130 = arith.constant 2.000000e+01 : f32
    %175 = vector.broadcast %cst_130 : f32 to vector<16x128xf32>
    %176 = arith.cmpf ogt, %174, %175 : vector<16x128xf32>
    %177 = arith.extui %176 : vector<16x128xi1> to vector<16x128xi32>
    %178 = arith.sitofp %177 : vector<16x128xi32> to vector<16x128xf32>
    %c0_131 = arith.constant 0 : index
    %c0_132 = arith.constant 0 : index
    %179 = vector.load %arg9[%c0_131, %c0_132] : memref<16x128xf32, #tpu.memory_space<vmem>>, vector<16x128xf32>
    tpu.vector_store %arg9[%c0_131, %c0_132], %167 {strides = array<i32>} : memref<16x128xf32, #tpu.memory_space<vmem>>, vector<16x128xf32>,
    %c0_133 = arith.constant 0 : index
    %c0_134 = arith.constant 0 : index
    %180 = vector.load %arg10[%c0_133, %c0_134] : memref<16x128xf32, #tpu.memory_space<vmem>>, vector<16x128xf32>
    tpu.vector_store %arg10[%c0_133, %c0_134], %174 {strides = array<i32>} : memref<16x128xf32, #tpu.memory_space<vmem>>, vector<16x128xf32>,
    %c0_135 = arith.constant 0 : index
    %c0_136 = arith.constant 0 : index
    %181 = vector.load %arg8[%c0_135, %c0_136] : memref<16x128xf32, #tpu.memory_space<vmem>>, vector<16x128xf32>
    tpu.vector_store %arg8[%c0_135, %c0_136], %178 {strides = array<i32>} : memref<16x128xf32, #tpu.memory_space<vmem>>, vector<16x128xf32>,
    %182 = arith.truncf %178 : vector<16x128xf32> to vector<16x128xbf16>
    %183 = arith.index_cast %c5_i32 : i32 to index
    %c0_137 = arith.constant 0 : index
    %c0_138 = arith.constant 0 : index
    %184 = vector.load %arg6[%183, %c0_137, %c0_138] : memref<8x16x128xbf16, #tpu.memory_space<vmem>>, vector<1x16x128xbf16>
    %185 = vector.shape_cast %184 : vector<1x16x128xbf16> to vector<16x128xbf16>
    %186 = vector.shape_cast %182 : vector<16x128xbf16> to vector<1x16x128xbf16>
    tpu.vector_store %arg6[%183, %c0_137, %c0_138], %186 {strides = array<i32>} : memref<8x16x128xbf16, #tpu.memory_space<vmem>>, vector<1x16x128xbf16>,
    %c6_i32 = arith.constant 6 : i32
    %c0_139 = arith.constant 0 : index
    %c0_140 = arith.constant 0 : index
    %187 = vector.load %arg8[%c0_139, %c0_140] : memref<16x128xf32, #tpu.memory_space<vmem>>, vector<16x128xf32>
    %cst_141 = arith.constant dense<0.000000e+00> : vector<16x128xf32>
    %188 = tpu.matmul %187, %12, %cst_141 {dimension_numbers = #tpu.dot_dimension_numbers<[1], [0], [0], [1], [0, 0, 1, 1], [], []>} : vector<16x128xf32>, vector<128x128xf32>, vector<16x128xf32> -> vector<16x128xf32>
    %c0_142 = arith.constant 0 : index
    %c0_143 = arith.constant 0 : index
    %189 = vector.load %arg9[%c0_142, %c0_143] : memref<16x128xf32, #tpu.memory_space<vmem>>, vector<16x128xf32>
    %cst_144 = arith.constant 0.899999976 : f32
    %190 = vector.broadcast %cst_144 : f32 to vector<16x128xf32>
    %191 = arith.mulf %190, %189 : vector<16x128xf32>
    %192 = arith.index_cast %c6_i32 : i32 to index
    %c0_145 = arith.constant 0 : index
    %c0_146 = arith.constant 0 : index
    %193 = vector.load %arg7[%192, %c0_145, %c0_146] : memref<8x16x128xf32, #tpu.memory_space<vmem>>, vector<1x16x128xf32>
    %194 = vector.shape_cast %193 : vector<1x16x128xf32> to vector<16x128xf32>
    %195 = arith.addf %191, %194 : vector<16x128xf32>
    %196 = arith.addf %195, %188 : vector<16x128xf32>
    %c0_147 = arith.constant 0 : index
    %c0_148 = arith.constant 0 : index
    %197 = vector.load %arg10[%c0_147, %c0_148] : memref<16x128xf32, #tpu.memory_space<vmem>>, vector<16x128xf32>
    %cst_149 = arith.constant 0.899999976 : f32
    %198 = vector.broadcast %cst_149 : f32 to vector<16x128xf32>
    %199 = arith.mulf %198, %197 : vector<16x128xf32>
    %200 = arith.addf %199, %196 : vector<16x128xf32>
    %cst_150 = arith.constant 2.000000e+01 : f32
    %201 = vector.broadcast %cst_150 : f32 to vector<16x128xf32>
    %202 = arith.mulf %187, %201 : vector<16x128xf32>
    %203 = arith.subf %200, %202 : vector<16x128xf32>
    %cst_151 = arith.constant 2.000000e+01 : f32
    %204 = vector.broadcast %cst_151 : f32 to vector<16x128xf32>
    %205 = arith.cmpf ogt, %203, %204 : vector<16x128xf32>
    %206 = arith.extui %205 : vector<16x128xi1> to vector<16x128xi32>
    %207 = arith.sitofp %206 : vector<16x128xi32> to vector<16x128xf32>
    %c0_152 = arith.constant 0 : index
    %c0_153 = arith.constant 0 : index
    %208 = vector.load %arg9[%c0_152, %c0_153] : memref<16x128xf32, #tpu.memory_space<vmem>>, vector<16x128xf32>
    tpu.vector_store %arg9[%c0_152, %c0_153], %196 {strides = array<i32>} : memref<16x128xf32, #tpu.memory_space<vmem>>, vector<16x128xf32>,
    %c0_154 = arith.constant 0 : index
    %c0_155 = arith.constant 0 : index
    %209 = vector.load %arg10[%c0_154, %c0_155] : memref<16x128xf32, #tpu.memory_space<vmem>>, vector<16x128xf32>
    tpu.vector_store %arg10[%c0_154, %c0_155], %203 {strides = array<i32>} : memref<16x128xf32, #tpu.memory_space<vmem>>, vector<16x128xf32>,
    %c0_156 = arith.constant 0 : index
    %c0_157 = arith.constant 0 : index
    %210 = vector.load %arg8[%c0_156, %c0_157] : memref<16x128xf32, #tpu.memory_space<vmem>>, vector<16x128xf32>
    tpu.vector_store %arg8[%c0_156, %c0_157], %207 {strides = array<i32>} : memref<16x128xf32, #tpu.memory_space<vmem>>, vector<16x128xf32>,
    %211 = arith.truncf %207 : vector<16x128xf32> to vector<16x128xbf16>
    %212 = arith.index_cast %c6_i32 : i32 to index
    %c0_158 = arith.constant 0 : index
    %c0_159 = arith.constant 0 : index
    %213 = vector.load %arg6[%212, %c0_158, %c0_159] : memref<8x16x128xbf16, #tpu.memory_space<vmem>>, vector<1x16x128xbf16>
    %214 = vector.shape_cast %213 : vector<1x16x128xbf16> to vector<16x128xbf16>
    %215 = vector.shape_cast %211 : vector<16x128xbf16> to vector<1x16x128xbf16>
    tpu.vector_store %arg6[%212, %c0_158, %c0_159], %215 {strides = array<i32>} : memref<8x16x128xbf16, #tpu.memory_space<vmem>>, vector<1x16x128xbf16>,
    %c7_i32 = arith.constant 7 : i32
    %c0_160 = arith.constant 0 : index
    %c0_161 = arith.constant 0 : index
    %216 = vector.load %arg8[%c0_160, %c0_161] : memref<16x128xf32, #tpu.memory_space<vmem>>, vector<16x128xf32>
    %cst_162 = arith.constant dense<0.000000e+00> : vector<16x128xf32>
    %217 = tpu.matmul %216, %12, %cst_162 {dimension_numbers = #tpu.dot_dimension_numbers<[1], [0], [0], [1], [0, 0, 1, 1], [], []>} : vector<16x128xf32>, vector<128x128xf32>, vector<16x128xf32> -> vector<16x128xf32>
    %c0_163 = arith.constant 0 : index
    %c0_164 = arith.constant 0 : index
    %218 = vector.load %arg9[%c0_163, %c0_164] : memref<16x128xf32, #tpu.memory_space<vmem>>, vector<16x128xf32>
    %cst_165 = arith.constant 0.899999976 : f32
    %219 = vector.broadcast %cst_165 : f32 to vector<16x128xf32>
    %220 = arith.mulf %219, %218 : vector<16x128xf32>
    %221 = arith.index_cast %c7_i32 : i32 to index
    %c0_166 = arith.constant 0 : index
    %c0_167 = arith.constant 0 : index
    %222 = vector.load %arg7[%221, %c0_166, %c0_167] : memref<8x16x128xf32, #tpu.memory_space<vmem>>, vector<1x16x128xf32>
    %223 = vector.shape_cast %222 : vector<1x16x128xf32> to vector<16x128xf32>
    %224 = arith.addf %220, %223 : vector<16x128xf32>
    %225 = arith.addf %224, %217 : vector<16x128xf32>
    %c0_168 = arith.constant 0 : index
    %c0_169 = arith.constant 0 : index
    %226 = vector.load %arg10[%c0_168, %c0_169] : memref<16x128xf32, #tpu.memory_space<vmem>>, vector<16x128xf32>
    %cst_170 = arith.constant 0.899999976 : f32
    %227 = vector.broadcast %cst_170 : f32 to vector<16x128xf32>
    %228 = arith.mulf %227, %226 : vector<16x128xf32>
    %229 = arith.addf %228, %225 : vector<16x128xf32>
    %cst_171 = arith.constant 2.000000e+01 : f32
    %230 = vector.broadcast %cst_171 : f32 to vector<16x128xf32>
    %231 = arith.mulf %216, %230 : vector<16x128xf32>
    %232 = arith.subf %229, %231 : vector<16x128xf32>
    %cst_172 = arith.constant 2.000000e+01 : f32
    %233 = vector.broadcast %cst_172 : f32 to vector<16x128xf32>
    %234 = arith.cmpf ogt, %232, %233 : vector<16x128xf32>
    %235 = arith.extui %234 : vector<16x128xi1> to vector<16x128xi32>
    %236 = arith.sitofp %235 : vector<16x128xi32> to vector<16x128xf32>
    %c0_173 = arith.constant 0 : index
    %c0_174 = arith.constant 0 : index
    %237 = vector.load %arg9[%c0_173, %c0_174] : memref<16x128xf32, #tpu.memory_space<vmem>>, vector<16x128xf32>
    tpu.vector_store %arg9[%c0_173, %c0_174], %225 {strides = array<i32>} : memref<16x128xf32, #tpu.memory_space<vmem>>, vector<16x128xf32>,
    %c0_175 = arith.constant 0 : index
    %c0_176 = arith.constant 0 : index
    %238 = vector.load %arg10[%c0_175, %c0_176] : memref<16x128xf32, #tpu.memory_space<vmem>>, vector<16x128xf32>
    tpu.vector_store %arg10[%c0_175, %c0_176], %232 {strides = array<i32>} : memref<16x128xf32, #tpu.memory_space<vmem>>, vector<16x128xf32>,
    %c0_177 = arith.constant 0 : index
    %c0_178 = arith.constant 0 : index
    %239 = vector.load %arg8[%c0_177, %c0_178] : memref<16x128xf32, #tpu.memory_space<vmem>>, vector<16x128xf32>
    tpu.vector_store %arg8[%c0_177, %c0_178], %236 {strides = array<i32>} : memref<16x128xf32, #tpu.memory_space<vmem>>, vector<16x128xf32>,
    %240 = arith.truncf %236 : vector<16x128xf32> to vector<16x128xbf16>
    %241 = arith.index_cast %c7_i32 : i32 to index
    %c0_179 = arith.constant 0 : index
    %c0_180 = arith.constant 0 : index
    %242 = vector.load %arg6[%241, %c0_179, %c0_180] : memref<8x16x128xbf16, #tpu.memory_space<vmem>>, vector<1x16x128xbf16>
    %243 = vector.shape_cast %242 : vector<1x16x128xbf16> to vector<16x128xbf16>
    %244 = vector.shape_cast %240 : vector<16x128xbf16> to vector<1x16x128xbf16>
    tpu.vector_store %arg6[%241, %c0_179, %c0_180], %244 {strides = array<i32>} : memref<8x16x128xbf16, #tpu.memory_space<vmem>>, vector<1x16x128xbf16>,
    %c8_i32 = arith.constant 8 : i32
    return
  }
  func.func @transform_0(%arg0: i32, %arg1: i32) -> (i32, i32, i32) {
    %c0_i32 = arith.constant 0 : i32
    %c0_i32_0 = arith.constant 0 : i32
    return %arg1, %arg0, %c0_i32 : i32, i32, i32
  }
  func.func @transform_1(%arg0: i32, %arg1: i32) -> (i32, i32) {
    %c0_i32 = arith.constant 0 : i32
    %c0_i32_0 = arith.constant 0 : i32
    %c0_i32_1 = arith.constant 0 : i32
    return %c0_i32, %c0_i32_0 : i32, i32
  }
  func.func @transform_2(%arg0: i32, %arg1: i32) -> (i32, i32) {
    %c0_i32 = arith.constant 0 : i32
    %c0_i32_0 = arith.constant 0 : i32
    %c0_i32_1 = arith.constant 0 : i32
    return %c0_i32, %c0_i32_0 : i32, i32
  }
  func.func @transform_3(%arg0: i32, %arg1: i32) -> (i32, i32) {
    %c0_i32 = arith.constant 0 : i32
    %c0_i32_0 = arith.constant 0 : i32
    %c0_i32_1 = arith.constant 0 : i32
    return %c0_i32, %c0_i32_0 : i32, i32
  }
  func.func @transform_4(%arg0: i32, %arg1: i32) -> (i32, i32, i32) {
    %c0_i32 = arith.constant 0 : i32
    %c0_i32_0 = arith.constant 0 : i32
    return %arg1, %arg0, %c0_i32 : i32, i32, i32
  }
}

</mosaic_0001>

<llo_original>
// kernel: tpu_custom_call.1
$region0: #{tpu_custom_call.1}
  #allocation0 [shape = 'u32[]', space=smem, size = 0x4, offset = 0x4, fixed_abs, tag = 'smem constant byte address 0x4 - core index']
  #allocation1 [shape = 'u32[144,128]{1,0:T(1,128)}', space=vmem, size = 0x12000, scoped, tag = 'internal scratch']
  #allocation2 [shape = 'f32[8,16,128]{2,1,0:T(8,128)}', space=vmem, size = 0x10000, scoped, tag = 'scratch operand']
  #allocation3 [shape = 'f32[16,128]{1,0:T(8,128)}', space=vmem, size = 0x2000, scoped, tag = 'scratch operand']
  #allocation4 [shape = 'f32[16,128]{1,0:T(8,128)}', space=vmem, size = 0x2000, scoped, tag = 'scratch operand']
  #allocation5 [shape = 'f32[16,128]{1,0:T(8,128)}', space=vmem, size = 0x2000, scoped, tag = 'scratch operand']
  %s0 = inlined_call_operand.hbm [shape: f32[8,16,16], index: 0, kind: input, shape index: {}]
  %s1 = inlined_call_operand.hbm [shape: f32[16,128], index: 1, kind: input, shape index: {}]
  %s2 = inlined_call_operand.vmem [shape: f32[1,128], index: 2, kind: input, shape index: {}]
  %s3 = inlined_call_operand.hbm [shape: f32[128,128], index: 3, kind: input, shape index: {}]
  %s4 = inlined_call_operand.hbm [shape: bf16[8,16,128], index: 4, kind: output, shape index: {}]
  %s5 = sld [smem:[#allocation0]]
  $region42: #{tpu_custom_call.1} parent=0
    _
  %s7 = ssub.s32 1, %s5
  %s8 = scalar_select 0, %s7, %s5
  $region1: #{tpu_custom_call.1} parent=0
    #allocation6 [shape = 'u8[65536]{0}', space=vmem, size = 0x10000, scoped, tag = 'input window, operand 0, single buffered']
    #allocation7 [shape = 's32[1]{0}', space=sflag, size = 0x4, scoped, tag = 'scoped memory for tpu_custom_call.1']
    #allocation8 [shape = 's32[1]{0}', space=sflag, size = 0x4, scoped, tag = 'scoped memory for tpu_custom_call.1']
    #allocation9 [shape = 'u8[8192]{0}', space=vmem, size = 0x2000, scoped, tag = 'input window, operand 1, single buffered']
    #allocation10 [shape = 's32[1]{0}', space=sflag, size = 0x4, scoped, tag = 'scoped memory for tpu_custom_call.1']
    #allocation11 [shape = 'u8[65536]{0}', space=vmem, size = 0x10000, scoped, tag = 'input window, operand 3, single buffered']
    #allocation12 [shape = 'u8[32768]{0}', space=vmem, size = 0x8000, scoped, tag = 'output window, operand 0, single buffered']
    %9 = vsyncpa [#allocation7], 0
    %10 = vsyncpa [#allocation10], 0
    %11 = vsyncpa [#allocation8], 0
    // Predicated region
    $region2: #{tpu_custom_call.1} parent=1 // pred_check
      _
    $region3: #{tpu_custom_call.1} parent=1 // pred_check_branch
      %13 = sbr.rel (0) target = $region5
    $region4: #{tpu_custom_call.1} parent=1 // pred_region
      %s15 = ssub.s32 2048, 2048
      %16 = vsyncadd [#allocation7], %s15
      %s17 = sshll.u32 [#allocation6], 4
      %s18 = int_to_ptr.vmem [resolvable:$true] %s17
      %23 = dma.hbm_to_vmem [thread:$0]  %s0, 2048, %s18, [#allocation7], 128, 128, 8
    $region5: #{tpu_custom_call.1} parent=1 // pred_fallthru
      _
    // Predicated region
    $region6: #{tpu_custom_call.1} parent=1 // pred_check
      _
    $region7: #{tpu_custom_call.1} parent=1 // pred_check_branch
      %25 = sbr.rel (0) target = $region9
    $region8: #{tpu_custom_call.1} parent=1 // pred_region
      %s27 = ssub.s32 256, 256
      %28 = vsyncadd [#allocation10], %s27
      %s29 = sshll.u32 [#allocation9], 4
      %s30 = int_to_ptr.vmem [resolvable:$true] %s29
      %35 = dma.hbm_to_vmem [thread:$0]  %s1, 256, %s30, [#allocation10], 128, 128, 8
    $region9: #{tpu_custom_call.1} parent=1 // pred_fallthru
      _
    // Predicated region
    $region10: #{tpu_custom_call.1} parent=1 // pred_check
      _
    $region11: #{tpu_custom_call.1} parent=1 // pred_check_branch
      %37 = sbr.rel (0) target = $region13
    $region12: #{tpu_custom_call.1} parent=1 // pred_region
      _
    $region13: #{tpu_custom_call.1} parent=1 // pred_fallthru
      _
    // Predicated region
    $region14: #{tpu_custom_call.1} parent=1 // pred_check
      _
    $region15: #{tpu_custom_call.1} parent=1 // pred_check_branch
      %39 = sbr.rel (0) target = $region17
    $region16: #{tpu_custom_call.1} parent=1 // pred_region
      %s41 = ssub.s32 2048, 2048
      %42 = vsyncadd [#allocation10], %s41
      %s43 = sshll.u32 [#allocation11], 4
      %s44 = int_to_ptr.vmem [resolvable:$true] %s43
      %49 = dma.hbm_to_vmem [thread:$0]  %s3, 2048, %s44, [#allocation10], 128, 128, 8
    $region17: #{tpu_custom_call.1} parent=1 // pred_fallthru
      _
    // Predicated region
    $region18: #{tpu_custom_call.1} parent=1 // pred_check
      _
    $region19: #{tpu_custom_call.1} parent=1 // pred_check_branch
      %51 = sbr.rel (0) target = $region21
    $region20: #{tpu_custom_call.1} parent=1 // pred_region
      %52 = dma.done [#allocation7], 2048
    $region21: #{tpu_custom_call.1} parent=1 // pred_fallthru
      _
    // Predicated region
    $region22: #{tpu_custom_call.1} parent=1 // pred_check
      _
    $region23: #{tpu_custom_call.1} parent=1 // pred_check_branch
      %54 = sbr.rel (0) target = $region25
    $region24: #{tpu_custom_call.1} parent=1 // pred_region
      %55 = dma.done [#allocation10], 256
    $region25: #{tpu_custom_call.1} parent=1 // pred_fallthru
      _
    // Predicated region
    $region26: #{tpu_custom_call.1} parent=1 // pred_check
      _
    $region27: #{tpu_custom_call.1} parent=1 // pred_check_branch
      %57 = sbr.rel (0) target = $region29
    $region28: #{tpu_custom_call.1} parent=1 // pred_region
      %58 = dma.done [#allocation10], 2048
    $region29: #{tpu_custom_call.1} parent=1 // pred_fallthru
      _
    %p59 = scmp.eq.s32.totalorder 0, 0
    // Predicated region
    $region30: #{tpu_custom_call.1} parent=1 // pred_check
      %p60 = pneg %p59
    $region31: #{tpu_custom_call.1} parent=1 // pred_check_branch
      %62 = sbr.rel (%p60) target = $region33
    $region32: #{tpu_custom_call.1} parent=1 // pred_region
      %63 = vst [vmem:[#allocation3] sm:$0xff] 0.0
      %64 = vst [vmem:[#allocation3 + $0x8] sm:$0xff] 0.0
      %65 = vst [vmem:[#allocation4] sm:$0xff] 0.0
      %66 = vst [vmem:[#allocation4 + $0x8] sm:$0xff] 0.0
      %67 = vst [vmem:[#allocation5] sm:$0xff] 0.0
      %68 = vst [vmem:[#allocation5 + $0x8] sm:$0xff] 0.0
    $region33: #{tpu_custom_call.1} parent=1 // pred_fallthru
      _
    %v69 = vld [vmem:[#allocation6] sm:$0xff]
    %v70 = vld [vmem:[#allocation6 + $0x8] sm:$0xff]
    %v71 = vld [vmem:[#allocation6 + $0x10] sm:$0xff]
    %v72 = vld [vmem:[#allocation6 + $0x18] sm:$0xff]
    %v73 = vld [vmem:[#allocation6 + $0x20] sm:$0xff]
    %v74 = vld [vmem:[#allocation6 + $0x28] sm:$0xff]
    %v75 = vld [vmem:[#allocation6 + $0x30] sm:$0xff]
    %v76 = vld [vmem:[#allocation6 + $0x38] sm:$0xff]
    %v77 = vld [vmem:[#allocation6 + $0x40] sm:$0xff]
    %v78 = vld [vmem:[#allocation6 + $0x48] sm:$0xff]
    %v79 = vld [vmem:[#allocation6 + $0x50] sm:$0xff]
    %v80 = vld [vmem:[#allocation6 + $0x58] sm:$0xff]
    %v81 = vld [vmem:[#allocation6 + $0x60] sm:$0xff]
    %v82 = vld [vmem:[#allocation6 + $0x68] sm:$0xff]
    %v83 = vld [vmem:[#allocation6 + $0x70] sm:$0xff]
    %v84 = vld [vmem:[#allocation6 + $0x78] sm:$0xff]
    %v85 = vld [vmem:[#allocation9] sm:$0xff]
    %v86 = vld [vmem:[#allocation9 + $0x8] sm:$0xff]
    %v87 = vld [vmem:[%s2] sm:$0x1]
    %v89 = vlaneseq
    %v90 = vshrl.u32 %v89, 7
    %v91 = vsub.s32 0, %v90
    %v92 = vrot.slane %v87, %v91
    %vm94 = vcmask 130048
    %v96 = vsel %vm94, %v69, 0
    %v99 = vsel %vm94, %v70, 0
    %v102 = vsel %vm94, %v71, 0
    %v105 = vsel %vm94, %v72, 0
    %v108 = vsel %vm94, %v73, 0
    %v111 = vsel %vm94, %v74, 0
    %v114 = vsel %vm94, %v75, 0
    %v117 = vsel %vm94, %v76, 0
    %v120 = vsel %vm94, %v77, 0
    %v123 = vsel %vm94, %v78, 0
    %v126 = vsel %vm94, %v79, 0
    %v129 = vsel %vm94, %v80, 0
    %v132 = vsel %vm94, %v81, 0
    %v135 = vsel %vm94, %v82, 0
    %v138 = vsel %vm94, %v83, 0
    %v141 = vsel %vm94, %v84, 0
    %143 = vmatprep.subr.mxu0 0.0
    %144 = vmatpush1.msra.mxu0 %v85
    %145 = vmatprep.subr.mxu0 0.0
    %146 = vmatpush1.msra.mxu0 %v86
    %147 = vmatprep.subr.mxu0 0.0
    %148 = vmatpush1.msra.mxu0 0.0
    %149 = vmatprep.subr.mxu0 0.0
    %150 = vmatpush1.msra.mxu0 0.0
    %151 = vmatprep.subr.mxu0 0.0
    %152 = vmatpush1.msra.mxu0 0.0
    %153 = vmatprep.subr.mxu0 0.0
    %154 = vmatpush1.msra.mxu0 0.0
    %155 = vmatprep.subr.mxu0 0.0
    %156 = vmatpush1.msra.mxu0 0.0
    %157 = vmatprep.subr.mxu0 0.0
    %158 = vmatpush1.msra.mxu0 0.0
    %159 = vmatprep.subr.mxu0 0.0
    %160 = vmatpush1.msra.mxu0 0.0
    %161 = vmatprep.subr.mxu0 0.0
    %162 = vmatpush1.msra.mxu0 0.0
    %163 = vmatprep.subr.mxu0 0.0
    %164 = vmatpush1.msra.mxu0 0.0
    %165 = vmatprep.subr.mxu0 0.0
    %166 = vmatpush1.msra.mxu0 0.0
    %167 = vmatprep.subr.mxu0 0.0
    %168 = vmatpush1.msra.mxu0 0.0
    %169 = vmatprep.subr.mxu0 0.0
    %170 = vmatpush1.msra.mxu0 0.0
    %171 = vmatprep.subr.mxu0 0.0
    %172 = vmatpush1.msra.mxu0 0.0
    %173 = vmatprep.subr.mxu0 0.0
    %174 = vmatpush1.msra.mxu0 0.0
    %175 = vmatprep.subr.mxu0 0.0
    %176 = vmatpush1.msra.mxu0 0.0
    %177 = vmatprep.subr.mxu0 0.0
    %178 = vmatpush1.msra.mxu0 0.0
    %179 = vmatprep.subr.mxu0 0.0
    %180 = vmatpush1.msra.mxu0 0.0
    %181 = vmatprep.subr.mxu0 0.0
    %182 = vmatpush1.msra.mxu0 0.0
    %183 = vmatprep.subr.mxu0 0.0
    %184 = vmatpush1.msra.mxu0 0.0
    %185 = vmatprep.subr.mxu0 0.0
    %186 = vmatpush1.msra.mxu0 0.0
    %187 = vmatprep.subr.mxu0 0.0
    %188 = vmatpush1.msra.mxu0 0.0
    %189 = vmatprep.subr.mxu0 0.0
    %190 = vmatpush1.msra.mxu0 0.0
    %191 = vmatprep.subr.mxu0 0.0
    %192 = vmatpush1.msra.mxu0 0.0
    %193 = vmatprep.subr.mxu0 0.0
    %194 = vmatpush1.msra.mxu0 0.0
    %195 = vmatprep.subr.mxu0 0.0
    %196 = vmatpush1.msra.mxu0 0.0
    %197 = vmatprep.subr.mxu0 0.0
    %198 = vmatpush1.msra.mxu0 0.0
    %199 = vmatprep.subr.mxu0 0.0
    %200 = vmatpush1.msra.mxu0 0.0
    %201 = vmatprep.subr.mxu0 0.0
    %202 = vmatpush1.msra.mxu0 0.0
    %203 = vmatprep.subr.mxu0 0.0
    %204 = vmatpush1.msra.mxu0 0.0
    %205 = vmatprep.subr.mxu0 0.0
    %206 = vmatpush1.msra.mxu0 0.0
    %207 = vmatprep.mubr.f32.mxu0 0.0
    %208 = vmatmul.mubr.f32.gmra.mrb[0].mxu0 %v96
    %v209 = vpop.f32.mrb[0].mxu0
    %v210 = vadd.f32 %v92, %v209
    %v211 = vpop.f32.mrb[0].mxu0
    %212 = vmatprep.mubr.f32.mxu0 0.0
    %213 = vmatmul.mubr.f32.gmra.mrb[0].mxu0 %v99
    %v214 = vpop.f32.mrb[0].mxu0
    %v215 = vadd.f32 %v92, %v214
    %v216 = vpop.f32.mrb[0].mxu0
    %217 = vmatprep.mubr.f32.mxu0 0.0
    %218 = vmatmul.mubr.f32.gmra.mrb[0].mxu0 %v102
    %v219 = vpop.f32.mrb[0].mxu0
    %v220 = vadd.f32 %v92, %v219
    %v221 = vpop.f32.mrb[0].mxu0
    %222 = vmatprep.mubr.f32.mxu0 0.0
    %223 = vmatmul.mubr.f32.gmra.mrb[0].mxu0 %v105
    %v224 = vpop.f32.mrb[0].mxu0
    %v225 = vadd.f32 %v92, %v224
    %v226 = vpop.f32.mrb[0].mxu0
    %227 = vmatprep.mubr.f32.mxu0 0.0
    %228 = vmatmul.mubr.f32.gmra.mrb[0].mxu0 %v108
    %v229 = vpop.f32.mrb[0].mxu0
    %v230 = vadd.f32 %v92, %v229
    %v231 = vpop.f32.mrb[0].mxu0
    %232 = vmatprep.mubr.f32.mxu0 0.0
    %233 = vmatmul.mubr.f32.gmra.mrb[0].mxu0 %v111
    %v234 = vpop.f32.mrb[0].mxu0
    %v235 = vadd.f32 %v92, %v234
    %v236 = vpop.f32.mrb[0].mxu0
    %237 = vmatprep.mubr.f32.mxu0 0.0
    %238 = vmatmul.mubr.f32.gmra.mrb[0].mxu0 %v114
    %v239 = vpop.f32.mrb[0].mxu0
    %v240 = vadd.f32 %v92, %v239
    %v241 = vpop.f32.mrb[0].mxu0
    %242 = vmatprep.mubr.f32.mxu0 0.0
    %243 = vmatmul.mubr.f32.gmra.mrb[0].mxu0 %v117
    %v244 = vpop.f32.mrb[0].mxu0
    %v245 = vadd.f32 %v92, %v244
    %v246 = vpop.f32.mrb[0].mxu0
    %247 = vmatprep.mubr.f32.mxu0 0.0
    %248 = vmatmul.mubr.f32.gmra.mrb[0].mxu0 %v120
    %v249 = vpop.f32.mrb[0].mxu0
    %v250 = vadd.f32 %v92, %v249
    %v251 = vpop.f32.mrb[0].mxu0
    %252 = vmatprep.mubr.f32.mxu0 0.0
    %253 = vmatmul.mubr.f32.gmra.mrb[0].mxu0 %v123
    %v254 = vpop.f32.mrb[0].mxu0
    %v255 = vadd.f32 %v92, %v254
    %v256 = vpop.f32.mrb[0].mxu0
    %257 = vmatprep.mubr.f32.mxu0 0.0
    %258 = vmatmul.mubr.f32.gmra.mrb[0].mxu0 %v126
    %v259 = vpop.f32.mrb[0].mxu0
    %v260 = vadd.f32 %v92, %v259
    %v261 = vpop.f32.mrb[0].mxu0
    %262 = vmatprep.mubr.f32.mxu0 0.0
    %263 = vmatmul.mubr.f32.gmra.mrb[0].mxu0 %v129
    %v264 = vpop.f32.mrb[0].mxu0
    %v265 = vadd.f32 %v92, %v264
    %v266 = vpop.f32.mrb[0].mxu0
    %267 = vmatprep.mubr.f32.mxu0 0.0
    %268 = vmatmul.mubr.f32.gmra.mrb[0].mxu0 %v132
    %v269 = vpop.f32.mrb[0].mxu0
    %v270 = vadd.f32 %v92, %v269
    %v271 = vpop.f32.mrb[0].mxu0
    %272 = vmatprep.mubr.f32.mxu0 0.0
    %273 = vmatmul.mubr.f32.gmra.mrb[0].mxu0 %v135
    %v274 = vpop.f32.mrb[0].mxu0
    %v275 = vadd.f32 %v92, %v274
    %v276 = vpop.f32.mrb[0].mxu0
    %277 = vmatprep.mubr.f32.mxu0 0.0
    %278 = vmatmul.mubr.f32.gmra.mrb[0].mxu0 %v138
    %v279 = vpop.f32.mrb[0].mxu0
    %v280 = vadd.f32 %v92, %v279
    %v281 = vpop.f32.mrb[0].mxu0
    %282 = vmatprep.mubr.f32.mxu0 0.0
    %283 = vmatmul.mubr.f32.gmra.mrb[0].mxu0 %v141
    %v284 = vpop.f32.mrb[0].mxu0
    %v285 = vadd.f32 %v92, %v284
    %v286 = vpop.f32.mrb[0].mxu0
    %287 = vdwg.mxu0
    %288 = vst [vmem:[#allocation2] sm:$0xff] %v210
    %289 = vst [vmem:[#allocation2 + $0x8] sm:$0xff] %v215
    %290 = vst [vmem:[#allocation2 + $0x10] sm:$0xff] %v220
    %291 = vst [vmem:[#allocation2 + $0x18] sm:$0xff] %v225
    %292 = vst [vmem:[#allocation2 + $0x20] sm:$0xff] %v230
    %293 = vst [vmem:[#allocation2 + $0x28] sm:$0xff] %v235
    %294 = vst [vmem:[#allocation2 + $0x30] sm:$0xff] %v240
    %295 = vst [vmem:[#allocation2 + $0x38] sm:$0xff] %v245
    %296 = vst [vmem:[#allocation2 + $0x40] sm:$0xff] %v250
    %297 = vst [vmem:[#allocation2 + $0x48] sm:$0xff] %v255
    %298 = vst [vmem:[#allocation2 + $0x50] sm:$0xff] %v260
    %299 = vst [vmem:[#allocation2 + $0x58] sm:$0xff] %v265
    %300 = vst [vmem:[#allocation2 + $0x60] sm:$0xff] %v270
    %301 = vst [vmem:[#allocation2 + $0x68] sm:$0xff] %v275
    %302 = vst [vmem:[#allocation2 + $0x70] sm:$0xff] %v280
    %303 = vst [vmem:[#allocation2 + $0x78] sm:$0xff] %v285
    %v304 = vld [vmem:[#allocation11] sm:$0xff]
    %v305 = vld [vmem:[#allocation11 + $0x8] sm:$0xff]
    %v306 = vld [vmem:[#allocation11 + $0x10] sm:$0xff]
    %v307 = vld [vmem:[#allocation11 + $0x18] sm:$0xff]
    %v308 = vld [vmem:[#allocation11 + $0x20] sm:$0xff]
    %v309 = vld [vmem:[#allocation11 + $0x28] sm:$0xff]
    %v310 = vld [vmem:[#allocation11 + $0x30] sm:$0xff]
    %v311 = vld [vmem:[#allocation11 + $0x38] sm:$0xff]
    %v312 = vld [vmem:[#allocation11 + $0x40] sm:$0xff]
    %v313 = vld [vmem:[#allocation11 + $0x48] sm:$0xff]
    %v314 = vld [vmem:[#allocation11 + $0x50] sm:$0xff]
    %v315 = vld [vmem:[#allocation11 + $0x58] sm:$0xff]
    %v316 = vld [vmem:[#allocation11 + $0x60] sm:$0xff]
    %v317 = vld [vmem:[#allocation11 + $0x68] sm:$0xff]
    %v318 = vld [vmem:[#allocation11 + $0x70] sm:$0xff]
    %v319 = vld [vmem:[#allocation11 + $0x78] sm:$0xff]
    %v320 = vld [vmem:[#allocation3] sm:$0xff]
    %v321 = vld [vmem:[#allocation3 + $0x8] sm:$0xff]
    %322 = vmatprep.subr.mxu0 0.0
    %323 = vmatpush1.msra.mxu0 %v304
    %324 = vmatprep.subr.mxu0 0.0
    %325 = vmatpush1.msra.mxu0 %v305
    %326 = vmatprep.subr.mxu0 0.0
    %327 = vmatpush1.msra.mxu0 %v306
    %328 = vmatprep.subr.mxu0 0.0
    %329 = vmatpush1.msra.mxu0 %v307
    %330 = vmatprep.subr.mxu0 0.0
    %331 = vmatpush1.msra.mxu0 %v308
    %332 = vmatprep.subr.mxu0 0.0
    %333 = vmatpush1.msra.mxu0 %v309
    %334 = vmatprep.subr.mxu0 0.0
    %335 = vmatpush1.msra.mxu0 %v310
    %336 = vmatprep.subr.mxu0 0.0
    %337 = vmatpush1.msra.mxu0 %v311
    %338 = vmatprep.subr.mxu0 0.0
    %339 = vmatpush1.msra.mxu0 %v312
    %340 = vmatprep.subr.mxu0 0.0
    %341 = vmatpush1.msra.mxu0 %v313
    %342 = vmatprep.subr.mxu0 0.0
    %343 = vmatpush1.msra.mxu0 %v314
    %344 = vmatprep.subr.mxu0 0.0
    %345 = vmatpush1.msra.mxu0 %v315
    %346 = vmatprep.subr.mxu0 0.0
    %347 = vmatpush1.msra.mxu0 %v316
    %348 = vmatprep.subr.mxu0 0.0
    %349 = vmatpush1.msra.mxu0 %v317
    %350 = vmatprep.subr.mxu0 0.0
    %351 = vmatpush1.msra.mxu0 %v318
    %352 = vmatprep.subr.mxu0 0.0
    %353 = vmatpush1.msra.mxu0 %v319
    %354 = vmatprep.subr.mxu0 0.0
    %355 = vmatpush1.msra.mxu0 0.0
    %356 = vmatprep.subr.mxu0 0.0
    %357 = vmatpush1.msra.mxu0 0.0
    %358 = vmatprep.subr.mxu0 0.0
    %359 = vmatpush1.msra.mxu0 0.0
    %360 = vmatprep.subr.mxu0 0.0
    %361 = vmatpush1.msra.mxu0 0.0
    %362 = vmatprep.subr.mxu0 0.0
    %363 = vmatpush1.msra.mxu0 0.0
    %364 = vmatprep.subr.mxu0 0.0
    %365 = vmatpush1.msra.mxu0 0.0
    %366 = vmatprep.subr.mxu0 0.0
    %367 = vmatpush1.msra.mxu0 0.0
    %368 = vmatprep.subr.mxu0 0.0
    %369 = vmatpush1.msra.mxu0 0.0
    %370 = vmatprep.subr.mxu0 0.0
    %371 = vmatpush1.msra.mxu0 0.0
    %372 = vmatprep.subr.mxu0 0.0
    %373 = vmatpush1.msra.mxu0 0.0
    %374 = vmatprep.subr.mxu0 0.0
    %375 = vmatpush1.msra.mxu0 0.0
    %376 = vmatprep.subr.mxu0 0.0
    %377 = vmatpush1.msra.mxu0 0.0
    %378 = vmatprep.subr.mxu0 0.0
    %379 = vmatpush1.msra.mxu0 0.0
    %380 = vmatprep.subr.mxu0 0.0
    %381 = vmatpush1.msra.mxu0 0.0
    %382 = vmatprep.subr.mxu0 0.0
    %383 = vmatpush1.msra.mxu0 0.0
    %384 = vmatprep.subr.mxu0 0.0
    %385 = vmatpush1.msra.mxu0 0.0
    %386 = vmatprep.mubr.f32.mxu0 0.0
    %387 = vmatmul.mubr.f32.gmra.mrb[0].mxu0 %v320
    %v388 = vpop.f32.mrb[0].mxu0
    %v389 = vadd.f32 0.0, %v388
    %v390 = vpop.f32.mrb[0].mxu0
    %391 = vmatprep.mubr.f32.mxu0 0.0
    %392 = vmatmul.mubr.f32.gmra.mrb[0].mxu0 %v321
    %v393 = vpop.f32.mrb[0].mxu0
    %v394 = vadd.f32 0.0, %v393
    %v395 = vpop.f32.mrb[0].mxu0
    %396 = vdwg.mxu0
    %v397 = vld [vmem:[#allocation4] sm:$0xff]
    %v398 = vld [vmem:[#allocation4 + $0x8] sm:$0xff]
    %v399 = vmul.f32 %v397, 0.9
    %v400 = vmul.f32 %v398, 0.9
    %v401 = vld [vmem:[#allocation2] sm:$0xff]
    %v402 = vld [vmem:[#allocation2 + $0x8] sm:$0xff]
    %v403 = vadd.f32 %v399, %v401
    %v404 = vadd.f32 %v400, %v402
    %v405 = vadd.f32 %v403, %v389
    %v406 = vadd.f32 %v404, %v394
    %v407 = vld [vmem:[#allocation5] sm:$0xff]
    %v408 = vld [vmem:[#allocation5 + $0x8] sm:$0xff]
    %v409 = vmul.f32 %v407, 0.9
    %v410 = vmul.f32 %v408, 0.9
    %v411 = vadd.f32 %v409, %v405
    %v412 = vadd.f32 %v410, %v406
    %v413 = vmul.f32 %v320, 20.0
    %v414 = vmul.f32 %v321, 20.0
    %v415 = vsub.f32 %v411, %v413
    %v416 = vsub.f32 %v412, %v414
    %vm417 = vcmp.gt.f32.partialorder %v415, 20.0
    %vm418 = vcmp.gt.f32.partialorder %v416, 20.0
    %v419 = vsel %vm417, 1, 0
    %v420 = vsel %vm418, 1, 0
    %v421 = vcvt.s32.f32 %v419
    %v422 = vcvt.s32.f32 %v420
    %423 = vst [vmem:[#allocation4] sm:$0xff] %v405
    %424 = vst [vmem:[#allocation4 + $0x8] sm:$0xff] %v406
    %425 = vst [vmem:[#allocation5] sm:$0xff] %v415
    %426 = vst [vmem:[#allocation5 + $0x8] sm:$0xff] %v416
    %427 = vst [vmem:[#allocation3] sm:$0xff] %v421
    %428 = vst [vmem:[#allocation3 + $0x8] sm:$0xff] %v422
    %v429 = vpack.c.bf16 %v422, %v421
    %v431 = vunpack.c.l.b16 %v429
    %v432 = vunpack.c.h.b16 %v429
    %v433 = vpack.c.b16 %v431, %v431
    %v434 = vpack.c.b16 %v432, %v432
    %437 = vst [vmem:[#allocation12] sm:$0xf] %v433
    %438 = vst [vmem:[#allocation12 + $0x4] sm:$0xf] %v434
    %v439 = vld [vmem:[#allocation3] sm:$0xff]
    %v440 = vld [vmem:[#allocation3 + $0x8] sm:$0xff]
    %441 = vmatprep.subr.mxu0 0.0
    %442 = vmatpush1.msra.mxu0 %v304
    %443 = vmatprep.subr.mxu0 0.0
    %444 = vmatpush1.msra.mxu0 %v305
    %445 = vmatprep.subr.mxu0 0.0
    %446 = vmatpush1.msra.mxu0 %v306
    %447 = vmatprep.subr.mxu0 0.0
    %448 = vmatpush1.msra.mxu0 %v307
    %449 = vmatprep.subr.mxu0 0.0
    %450 = vmatpush1.msra.mxu0 %v308
    %451 = vmatprep.subr.mxu0 0.0
    %452 = vmatpush1.msra.mxu0 %v309
    %453 = vmatprep.subr.mxu0 0.0
    %454 = vmatpush1.msra.mxu0 %v310
    %455 = vmatprep.subr.mxu0 0.0
    %456 = vmatpush1.msra.mxu0 %v311
    %457 = vmatprep.subr.mxu0 0.0
    %458 = vmatpush1.msra.mxu0 %v312
    %459 = vmatprep.subr.mxu0 0.0
    %460 = vmatpush1.msra.mxu0 %v313
    %461 = vmatprep.subr.mxu0 0.0
    %462 = vmatpush1.msra.mxu0 %v314
    %463 = vmatprep.subr.mxu0 0.0
    %464 = vmatpush1.msra.mxu0 %v315
    %465 = vmatprep.subr.mxu0 0.0
    %466 = vmatpush1.msra.mxu0 %v316
    %467 = vmatprep.subr.mxu0 0.0
    %468 = vmatpush1.msra.mxu0 %v317
    %469 = vmatprep.subr.mxu0 0.0
    %470 = vmatpush1.msra.mxu0 %v318
    %471 = vmatprep.subr.mxu0 0.0
    %472 = vmatpush1.msra.mxu0 %v319
    %473 = vmatprep.subr.mxu0 0.0
    %474 = vmatpush1.msra.mxu0 0.0
    %475 = vmatprep.subr.mxu0 0.0
    %476 = vmatpush1.msra.mxu0 0.0
    %477 = vmatprep.subr.mxu0 0.0
    %478 = vmatpush1.msra.mxu0 0.0
    %479 = vmatprep.subr.mxu0 0.0
    %480 = vmatpush1.msra.mxu0 0.0
    %481 = vmatprep.subr.mxu0 0.0
    %482 = vmatpush1.msra.mxu0 0.0
    %483 = vmatprep.subr.mxu0 0.0
    %484 = vmatpush1.msra.mxu0 0.0
    %485 = vmatprep.subr.mxu0 0.0
    %486 = vmatpush1.msra.mxu0 0.0
    %487 = vmatprep.subr.mxu0 0.0
    %488 = vmatpush1.msra.mxu0 0.0
    %489 = vmatprep.subr.mxu0 0.0
    %490 = vmatpush1.msra.mxu0 0.0
    %491 = vmatprep.subr.mxu0 0.0
    %492 = vmatpush1.msra.mxu0 0.0
    %493 = vmatprep.subr.mxu0 0.0
    %494 = vmatpush1.msra.mxu0 0.0
    %495 = vmatprep.subr.mxu0 0.0
    %496 = vmatpush1.msra.mxu0 0.0
    %497 = vmatprep.subr.mxu0 0.0
    %498 = vmatpush1.msra.mxu0 0.0
    %499 = vmatprep.subr.mxu0 0.0
    %500 = vmatpush1.msra.mxu0 0.0
    %501 = vmatprep.subr.mxu0 0.0
    %502 = vmatpush1.msra.mxu0 0.0
    %503 = vmatprep.subr.mxu0 0.0
    %504 = vmatpush1.msra.mxu0 0.0
    %505 = vmatprep.mubr.f32.mxu0 0.0
    %506 = vmatmul.mubr.f32.gmra.mrb[0].mxu0 %v439
    %v507 = vpop.f32.mrb[0].mxu0
    %v508 = vadd.f32 0.0, %v507
    %v509 = vpop.f32.mrb[0].mxu0
    %510 = vmatprep.mubr.f32.mxu0 0.0
    %511 = vmatmul.mubr.f32.gmra.mrb[0].mxu0 %v440
    %v512 = vpop.f32.mrb[0].mxu0
    %v513 = vadd.f32 0.0, %v512
    %v514 = vpop.f32.mrb[0].mxu0
    %515 = vdwg.mxu0
    %v516 = vld [vmem:[#allocation4] sm:$0xff]
    %v517 = vld [vmem:[#allocation4 + $0x8] sm:$0xff]
    %v518 = vmul.f32 %v516, 0.9
    %v519 = vmul.f32 %v517, 0.9
    %s520 = scalar_lea.vmem [#allocation2], 16
    %v521 = vld [vmem:[%s520] sm:$0xff]
    %v522 = vld [vmem:[%s520 + $0x8] sm:$0xff]
    %v523 = vadd.f32 %v518, %v521
    %v524 = vadd.f32 %v519, %v522
    %v525 = vadd.f32 %v523, %v508
    %v526 = vadd.f32 %v524, %v513
    %v527 = vld [vmem:[#allocation5] sm:$0xff]
    %v528 = vld [vmem:[#allocation5 + $0x8] sm:$0xff]
    %v529 = vmul.f32 %v527, 0.9
    %v530 = vmul.f32 %v528, 0.9
    %v531 = vadd.f32 %v529, %v525
    %v532 = vadd.f32 %v530, %v526
    %v533 = vmul.f32 %v439, 20.0
    %v534 = vmul.f32 %v440, 20.0
    %v535 = vsub.f32 %v531, %v533
    %v536 = vsub.f32 %v532, %v534
    %vm537 = vcmp.gt.f32.partialorder %v535, 20.0
    %vm538 = vcmp.gt.f32.partialorder %v536, 20.0
    %v539 = vsel %vm537, 1, 0
    %v540 = vsel %vm538, 1, 0
    %v541 = vcvt.s32.f32 %v539
    %v542 = vcvt.s32.f32 %v540
    %543 = vst [vmem:[#allocation4] sm:$0xff] %v525
    %544 = vst [vmem:[#allocation4 + $0x8] sm:$0xff] %v526
    %545 = vst [vmem:[#allocation5] sm:$0xff] %v535
    %546 = vst [vmem:[#allocation5 + $0x8] sm:$0xff] %v536
    %547 = vst [vmem:[#allocation3] sm:$0xff] %v541
    %548 = vst [vmem:[#allocation3 + $0x8] sm:$0xff] %v542
    %v549 = vpack.c.bf16 %v542, %v541
    %v551 = vunpack.c.l.b16 %v549
    %v552 = vunpack.c.h.b16 %v549
    %v553 = vpack.c.b16 %v551, %v551
    %v554 = vpack.c.b16 %v552, %v552
    %s557 = scalar_lea.vmem [#allocation12], 8
    %558 = vst [vmem:[%s557] sm:$0xf] %v553
    %559 = vst [vmem:[%s557 + $0x4] sm:$0xf] %v554
    %v560 = vld [vmem:[#allocation3] sm:$0xff]
    %v561 = vld [vmem:[#allocation3 + $0x8] sm:$0xff]
    %562 = vmatprep.subr.mxu0 0.0
    %563 = vmatpush1.msra.mxu0 %v304
    %564 = vmatprep.subr.mxu0 0.0
    %565 = vmatpush1.msra.mxu0 %v305
    %566 = vmatprep.subr.mxu0 0.0
    %567 = vmatpush1.msra.mxu0 %v306
    %568 = vmatprep.subr.mxu0 0.0
    %569 = vmatpush1.msra.mxu0 %v307
    %570 = vmatprep.subr.mxu0 0.0
    %571 = vmatpush1.msra.mxu0 %v308
    %572 = vmatprep.subr.mxu0 0.0
    %573 = vmatpush1.msra.mxu0 %v309
    %574 = vmatprep.subr.mxu0 0.0
    %575 = vmatpush1.msra.mxu0 %v310
    %576 = vmatprep.subr.mxu0 0.0
    %577 = vmatpush1.msra.mxu0 %v311
    %578 = vmatprep.subr.mxu0 0.0
    %579 = vmatpush1.msra.mxu0 %v312
    %580 = vmatprep.subr.mxu0 0.0
    %581 = vmatpush1.msra.mxu0 %v313
    %582 = vmatprep.subr.mxu0 0.0
    %583 = vmatpush1.msra.mxu0 %v314
    %584 = vmatprep.subr.mxu0 0.0
    %585 = vmatpush1.msra.mxu0 %v315
    %586 = vmatprep.subr.mxu0 0.0
    %587 = vmatpush1.msra.mxu0 %v316
    %588 = vmatprep.subr.mxu0 0.0
    %589 = vmatpush1.msra.mxu0 %v317
    %590 = vmatprep.subr.mxu0 0.0
    %591 = vmatpush1.msra.mxu0 %v318
    %592 = vmatprep.subr.mxu0 0.0
    %593 = vmatpush1.msra.mxu0 %v319
    %594 = vmatprep.subr.mxu0 0.0
    %595 = vmatpush1.msra.mxu0 0.0
    %596 = vmatprep.subr.mxu0 0.0
    %597 = vmatpush1.msra.mxu0 0.0
    %598 = vmatprep.subr.mxu0 0.0
    %599 = vmatpush1.msra.mxu0 0.0
    %600 = vmatprep.subr.mxu0 0.0
    %601 = vmatpush1.msra.mxu0 0.0
    %602 = vmatprep.subr.mxu0 0.0
    %603 = vmatpush1.msra.mxu0 0.0
    %604 = vmatprep.subr.mxu0 0.0
    %605 = vmatpush1.msra.mxu0 0.0
    %606 = vmatprep.subr.mxu0 0.0
    %607 = vmatpush1.msra.mxu0 0.0
    %608 = vmatprep.subr.mxu0 0.0
    %609 = vmatpush1.msra.mxu0 0.0
    %610 = vmatprep.subr.mxu0 0.0
    %611 = vmatpush1.msra.mxu0 0.0
    %612 = vmatprep.subr.mxu0 0.0
    %613 = vmatpush1.msra.mxu0 0.0
    %614 = vmatprep.subr.mxu0 0.0
    %615 = vmatpush1.msra.mxu0 0.0
    %616 = vmatprep.subr.mxu0 0.0
    %617 = vmatpush1.msra.mxu0 0.0
    %618 = vmatprep.subr.mxu0 0.0
    %619 = vmatpush1.msra.mxu0 0.0
    %620 = vmatprep.subr.mxu0 0.0
    %621 = vmatpush1.msra.mxu0 0.0
    %622 = vmatprep.subr.mxu0 0.0
    %623 = vmatpush1.msra.mxu0 0.0
    %624 = vmatprep.subr.mxu0 0.0
    %625 = vmatpush1.msra.mxu0 0.0
    %626 = vmatprep.mubr.f32.mxu0 0.0
    %627 = vmatmul.mubr.f32.gmra.mrb[0].mxu0 %v560
    %v628 = vpop.f32.mrb[0].mxu0
    %v629 = vadd.f32 0.0, %v628
    %v630 = vpop.f32.mrb[0].mxu0
    %631 = vmatprep.mubr.f32.mxu0 0.0
    %632 = vmatmul.mubr.f32.gmra.mrb[0].mxu0 %v561
    %v633 = vpop.f32.mrb[0].mxu0
    %v634 = vadd.f32 0.0, %v633
    %v635 = vpop.f32.mrb[0].mxu0
    %636 = vdwg.mxu0
    %v637 = vld [vmem:[#allocation4] sm:$0xff]
    %v638 = vld [vmem:[#allocation4 + $0x8] sm:$0xff]
    %v639 = vmul.f32 %v637, 0.9
    %v640 = vmul.f32 %v638, 0.9
    %s641 = scalar_lea.vmem [#allocation2], 32
    %v642 = vld [vmem:[%s641] sm:$0xff]
    %v643 = vld [vmem:[%s641 + $0x8] sm:$0xff]
    %v644 = vadd.f32 %v639, %v642
    %v645 = vadd.f32 %v640, %v643
    %v646 = vadd.f32 %v644, %v629
    %v647 = vadd.f32 %v645, %v634
    %v648 = vld [vmem:[#allocation5] sm:$0xff]
    %v649 = vld [vmem:[#allocation5 + $0x8] sm:$0xff]
    %v650 = vmul.f32 %v648, 0.9
    %v651 = vmul.f32 %v649, 0.9
    %v652 = vadd.f32 %v650, %v646
    %v653 = vadd.f32 %v651, %v647
    %v654 = vmul.f32 %v560, 20.0
    %v655 = vmul.f32 %v561, 20.0
    %v656 = vsub.f32 %v652, %v654
    %v657 = vsub.f32 %v653, %v655
    %vm658 = vcmp.gt.f32.partialorder %v656, 20.0
    %vm659 = vcmp.gt.f32.partialorder %v657, 20.0
    %v660 = vsel %vm658, 1, 0
    %v661 = vsel %vm659, 1, 0
    %v662 = vcvt.s32.f32 %v660
    %v663 = vcvt.s32.f32 %v661
    %664 = vst [vmem:[#allocation4] sm:$0xff] %v646
    %665 = vst [vmem:[#allocation4 + $0x8] sm:$0xff] %v647
    %666 = vst [vmem:[#allocation5] sm:$0xff] %v656
    %667 = vst [vmem:[#allocation5 + $0x8] sm:$0xff] %v657
    %668 = vst [vmem:[#allocation3] sm:$0xff] %v662
    %669 = vst [vmem:[#allocation3 + $0x8] sm:$0xff] %v663
    %v670 = vpack.c.bf16 %v663, %v662
    %v672 = vunpack.c.l.b16 %v670
    %v673 = vunpack.c.h.b16 %v670
    %v674 = vpack.c.b16 %v672, %v672
    %v675 = vpack.c.b16 %v673, %v673
    %s678 = scalar_lea.vmem [#allocation12], 16
    %679 = vst [vmem:[%s678] sm:$0xf] %v674
    %680 = vst [vmem:[%s678 + $0x4] sm:$0xf] %v675
    %v681 = vld [vmem:[#allocation3] sm:$0xff]
    %v682 = vld [vmem:[#allocation3 + $0x8] sm:$0xff]
    %683 = vmatprep.subr.mxu0 0.0
    %684 = vmatpush1.msra.mxu0 %v304
    %685 = vmatprep.subr.mxu0 0.0
    %686 = vmatpush1.msra.mxu0 %v305
    %687 = vmatprep.subr.mxu0 0.0
    %688 = vmatpush1.msra.mxu0 %v306
    %689 = vmatprep.subr.mxu0 0.0
    %690 = vmatpush1.msra.mxu0 %v307
    %691 = vmatprep.subr.mxu0 0.0
    %692 = vmatpush1.msra.mxu0 %v308
    %693 = vmatprep.subr.mxu0 0.0
    %694 = vmatpush1.msra.mxu0 %v309
    %695 = vmatprep.subr.mxu0 0.0
    %696 = vmatpush1.msra.mxu0 %v310
    %697 = vmatprep.subr.mxu0 0.0
    %698 = vmatpush1.msra.mxu0 %v311
    %699 = vmatprep.subr.mxu0 0.0
    %700 = vmatpush1.msra.mxu0 %v312
    %701 = vmatprep.subr.mxu0 0.0
    %702 = vmatpush1.msra.mxu0 %v313
    %703 = vmatprep.subr.mxu0 0.0
    %704 = vmatpush1.msra.mxu0 %v314
    %705 = vmatprep.subr.mxu0 0.0
    %706 = vmatpush1.msra.mxu0 %v315
    %707 = vmatprep.subr.mxu0 0.0
    %708 = vmatpush1.msra.mxu0 %v316
    %709 = vmatprep.subr.mxu0 0.0
    %710 = vmatpush1.msra.mxu0 %v317
    %711 = vmatprep.subr.mxu0 0.0
    %712 = vmatpush1.msra.mxu0 %v318
    %713 = vmatprep.subr.mxu0 0.0
    %714 = vmatpush1.msra.mxu0 %v319
    %715 = vmatprep.subr.mxu0 0.0
    %716 = vmatpush1.msra.mxu0 0.0
    %717 = vmatprep.subr.mxu0 0.0
    %718 = vmatpush1.msra.mxu0 0.0
    %719 = vmatprep.subr.mxu0 0.0
    %720 = vmatpush1.msra.mxu0 0.0
    %721 = vmatprep.subr.mxu0 0.0
    %722 = vmatpush1.msra.mxu0 0.0
    %723 = vmatprep.subr.mxu0 0.0
    %724 = vmatpush1.msra.mxu0 0.0
    %725 = vmatprep.subr.mxu0 0.0
    %726 = vmatpush1.msra.mxu0 0.0
    %727 = vmatprep.subr.mxu0 0.0
    %728 = vmatpush1.msra.mxu0 0.0
    %729 = vmatprep.subr.mxu0 0.0
    %730 = vmatpush1.msra.mxu0 0.0
    %731 = vmatprep.subr.mxu0 0.0
    %732 = vmatpush1.msra.mxu0 0.0
    %733 = vmatprep.subr.mxu0 0.0
    %734 = vmatpush1.msra.mxu0 0.0
    %735 = vmatprep.subr.mxu0 0.0
    %736 = vmatpush1.msra.mxu0 0.0
    %737 = vmatprep.subr.mxu0 0.0
    %738 = vmatpush1.msra.mxu0 0.0
    %739 = vmatprep.subr.mxu0 0.0
    %740 = vmatpush1.msra.mxu0 0.0
    %741 = vmatprep.subr.mxu0 0.0
    %742 = vmatpush1.msra.mxu0 0.0
    %743 = vmatprep.subr.mxu0 0.0
    %744 = vmatpush1.msra.mxu0 0.0
    %745 = vmatprep.subr.mxu0 0.0
    %746 = vmatpush1.msra.mxu0 0.0
    %747 = vmatprep.mubr.f32.mxu0 0.0
    %748 = vmatmul.mubr.f32.gmra.mrb[0].mxu0 %v681
    %v749 = vpop.f32.mrb[0].mxu0
    %v750 = vadd.f32 0.0, %v749
    %v751 = vpop.f32.mrb[0].mxu0
    %752 = vmatprep.mubr.f32.mxu0 0.0
    %753 = vmatmul.mubr.f32.gmra.mrb[0].mxu0 %v682
    %v754 = vpop.f32.mrb[0].mxu0
    %v755 = vadd.f32 0.0, %v754
    %v756 = vpop.f32.mrb[0].mxu0
    %757 = vdwg.mxu0
    %v758 = vld [vmem:[#allocation4] sm:$0xff]
    %v759 = vld [vmem:[#allocation4 + $0x8] sm:$0xff]
    %v760 = vmul.f32 %v758, 0.9
    %v761 = vmul.f32 %v759, 0.9
    %s762 = scalar_lea.vmem [#allocation2], 48
    %v763 = vld [vmem:[%s762] sm:$0xff]
    %v764 = vld [vmem:[%s762 + $0x8] sm:$0xff]
    %v765 = vadd.f32 %v760, %v763
    %v766 = vadd.f32 %v761, %v764
    %v767 = vadd.f32 %v765, %v750
    %v768 = vadd.f32 %v766, %v755
    %v769 = vld [vmem:[#allocation5] sm:$0xff]
    %v770 = vld [vmem:[#allocation5 + $0x8] sm:$0xff]
    %v771 = vmul.f32 %v769, 0.9
    %v772 = vmul.f32 %v770, 0.9
    %v773 = vadd.f32 %v771, %v767
    %v774 = vadd.f32 %v772, %v768
    %v775 = vmul.f32 %v681, 20.0
    %v776 = vmul.f32 %v682, 20.0
    %v777 = vsub.f32 %v773, %v775
    %v778 = vsub.f32 %v774, %v776
    %vm779 = vcmp.gt.f32.partialorder %v777, 20.0
    %vm780 = vcmp.gt.f32.partialorder %v778, 20.0
    %v781 = vsel %vm779, 1, 0
    %v782 = vsel %vm780, 1, 0
    %v783 = vcvt.s32.f32 %v781
    %v784 = vcvt.s32.f32 %v782
    %785 = vst [vmem:[#allocation4] sm:$0xff] %v767
    %786 = vst [vmem:[#allocation4 + $0x8] sm:$0xff] %v768
    %787 = vst [vmem:[#allocation5] sm:$0xff] %v777
    %788 = vst [vmem:[#allocation5 + $0x8] sm:$0xff] %v778
    %789 = vst [vmem:[#allocation3] sm:$0xff] %v783
    %790 = vst [vmem:[#allocation3 + $0x8] sm:$0xff] %v784
    %v791 = vpack.c.bf16 %v784, %v783
    %v793 = vunpack.c.l.b16 %v791
    %v794 = vunpack.c.h.b16 %v791
    %v795 = vpack.c.b16 %v793, %v793
    %v796 = vpack.c.b16 %v794, %v794
    %s799 = scalar_lea.vmem [#allocation12], 24
    %800 = vst [vmem:[%s799] sm:$0xf] %v795
    %801 = vst [vmem:[%s799 + $0x4] sm:$0xf] %v796
    %v802 = vld [vmem:[#allocation3] sm:$0xff]
    %v803 = vld [vmem:[#allocation3 + $0x8] sm:$0xff]
    %804 = vmatprep.subr.mxu0 0.0
    %805 = vmatpush1.msra.mxu0 %v304
    %806 = vmatprep.subr.mxu0 0.0
    %807 = vmatpush1.msra.mxu0 %v305
    %808 = vmatprep.subr.mxu0 0.0
    %809 = vmatpush1.msra.mxu0 %v306
    %810 = vmatprep.subr.mxu0 0.0
    %811 = vmatpush1.msra.mxu0 %v307
    %812 = vmatprep.subr.mxu0 0.0
    %813 = vmatpush1.msra.mxu0 %v308
    %814 = vmatprep.subr.mxu0 0.0
    %815 = vmatpush1.msra.mxu0 %v309
    %816 = vmatprep.subr.mxu0 0.0
    %817 = vmatpush1.msra.mxu0 %v310
    %818 = vmatprep.subr.mxu0 0.0
    %819 = vmatpush1.msra.mxu0 %v311
    %820 = vmatprep.subr.mxu0 0.0
    %821 = vmatpush1.msra.mxu0 %v312
    %822 = vmatprep.subr.mxu0 0.0
    %823 = vmatpush1.msra.mxu0 %v313
    %824 = vmatprep.subr.mxu0 0.0
    %825 = vmatpush1.msra.mxu0 %v314
    %826 = vmatprep.subr.mxu0 0.0
    %827 = vmatpush1.msra.mxu0 %v315
    %828 = vmatprep.subr.mxu0 0.0
    %829 = vmatpush1.msra.mxu0 %v316
    %830 = vmatprep.subr.mxu0 0.0
    %831 = vmatpush1.msra.mxu0 %v317
    %832 = vmatprep.subr.mxu0 0.0
    %833 = vmatpush1.msra.mxu0 %v318
    %834 = vmatprep.subr.mxu0 0.0
    %835 = vmatpush1.msra.mxu0 %v319
    %836 = vmatprep.subr.mxu0 0.0
    %837 = vmatpush1.msra.mxu0 0.0
    %838 = vmatprep.subr.mxu0 0.0
    %839 = vmatpush1.msra.mxu0 0.0
    %840 = vmatprep.subr.mxu0 0.0
    %841 = vmatpush1.msra.mxu0 0.0
    %842 = vmatprep.subr.mxu0 0.0
    %843 = vmatpush1.msra.mxu0 0.0
    %844 = vmatprep.subr.mxu0 0.0
    %845 = vmatpush1.msra.mxu0 0.0
    %846 = vmatprep.subr.mxu0 0.0
    %847 = vmatpush1.msra.mxu0 0.0
    %848 = vmatprep.subr.mxu0 0.0
    %849 = vmatpush1.msra.mxu0 0.0
    %850 = vmatprep.subr.mxu0 0.0
    %851 = vmatpush1.msra.mxu0 0.0
    %852 = vmatprep.subr.mxu0 0.0
    %853 = vmatpush1.msra.mxu0 0.0
    %854 = vmatprep.subr.mxu0 0.0
    %855 = vmatpush1.msra.mxu0 0.0
    %856 = vmatprep.subr.mxu0 0.0
    %857 = vmatpush1.msra.mxu0 0.0
    %858 = vmatprep.subr.mxu0 0.0
    %859 = vmatpush1.msra.mxu0 0.0
    %860 = vmatprep.subr.mxu0 0.0
    %861 = vmatpush1.msra.mxu0 0.0
    %862 = vmatprep.subr.mxu0 0.0
    %863 = vmatpush1.msra.mxu0 0.0
    %864 = vmatprep.subr.mxu0 0.0
    %865 = vmatpush1.msra.mxu0 0.0
    %866 = vmatprep.subr.mxu0 0.0
    %867 = vmatpush1.msra.mxu0 0.0
    %868 = vmatprep.mubr.f32.mxu0 0.0
    %869 = vmatmul.mubr.f32.gmra.mrb[0].mxu0 %v802
    %v870 = vpop.f32.mrb[0].mxu0
    %v871 = vadd.f32 0.0, %v870
    %v872 = vpop.f32.mrb[0].mxu0
    %873 = vmatprep.mubr.f32.mxu0 0.0
    %874 = vmatmul.mubr.f32.gmra.mrb[0].mxu0 %v803
    %v875 = vpop.f32.mrb[0].mxu0
    %v876 = vadd.f32 0.0, %v875
    %v877 = vpop.f32.mrb[0].mxu0
    %878 = vdwg.mxu0
    %v879 = vld [vmem:[#allocation4] sm:$0xff]
    %v880 = vld [vmem:[#allocation4 + $0x8] sm:$0xff]
    %v881 = vmul.f32 %v879, 0.9
    %v882 = vmul.f32 %v880, 0.9
    %s883 = scalar_lea.vmem [#allocation2], 64
    %v884 = vld [vmem:[%s883] sm:$0xff]
    %v885 = vld [vmem:[%s883 + $0x8] sm:$0xff]
    %v886 = vadd.f32 %v881, %v884
    %v887 = vadd.f32 %v882, %v885
    %v888 = vadd.f32 %v886, %v871
    %v889 = vadd.f32 %v887, %v876
    %v890 = vld [vmem:[#allocation5] sm:$0xff]
    %v891 = vld [vmem:[#allocation5 + $0x8] sm:$0xff]
    %v892 = vmul.f32 %v890, 0.9
    %v893 = vmul.f32 %v891, 0.9
    %v894 = vadd.f32 %v892, %v888
    %v895 = vadd.f32 %v893, %v889
    %v896 = vmul.f32 %v802, 20.0
    %v897 = vmul.f32 %v803, 20.0
    %v898 = vsub.f32 %v894, %v896
    %v899 = vsub.f32 %v895, %v897
    %vm900 = vcmp.gt.f32.partialorder %v898, 20.0
    %vm901 = vcmp.gt.f32.partialorder %v899, 20.0
    %v902 = vsel %vm900, 1, 0
    %v903 = vsel %vm901, 1, 0
    %v904 = vcvt.s32.f32 %v902
    %v905 = vcvt.s32.f32 %v903
    %906 = vst [vmem:[#allocation4] sm:$0xff] %v888
    %907 = vst [vmem:[#allocation4 + $0x8] sm:$0xff] %v889
    %908 = vst [vmem:[#allocation5] sm:$0xff] %v898
    %909 = vst [vmem:[#allocation5 + $0x8] sm:$0xff] %v899
    %910 = vst [vmem:[#allocation3] sm:$0xff] %v904
    %911 = vst [vmem:[#allocation3 + $0x8] sm:$0xff] %v905
    %v912 = vpack.c.bf16 %v905, %v904
    %v914 = vunpack.c.l.b16 %v912
    %v915 = vunpack.c.h.b16 %v912
    %v916 = vpack.c.b16 %v914, %v914
    %v917 = vpack.c.b16 %v915, %v915
    %s920 = scalar_lea.vmem [#allocation12], 32
    %921 = vst [vmem:[%s920] sm:$0xf] %v916
    %922 = vst [vmem:[%s920 + $0x4] sm:$0xf] %v917
    %v923 = vld [vmem:[#allocation3] sm:$0xff]
    %v924 = vld [vmem:[#allocation3 + $0x8] sm:$0xff]
    %925 = vmatprep.subr.mxu0 0.0
    %926 = vmatpush1.msra.mxu0 %v304
    %927 = vmatprep.subr.mxu0 0.0
    %928 = vmatpush1.msra.mxu0 %v305
    %929 = vmatprep.subr.mxu0 0.0
    %930 = vmatpush1.msra.mxu0 %v306
    %931 = vmatprep.subr.mxu0 0.0
    %932 = vmatpush1.msra.mxu0 %v307
    %933 = vmatprep.subr.mxu0 0.0
    %934 = vmatpush1.msra.mxu0 %v308
    %935 = vmatprep.subr.mxu0 0.0
    %936 = vmatpush1.msra.mxu0 %v309
    %937 = vmatprep.subr.mxu0 0.0
    %938 = vmatpush1.msra.mxu0 %v310
    %939 = vmatprep.subr.mxu0 0.0
    %940 = vmatpush1.msra.mxu0 %v311
    %941 = vmatprep.subr.mxu0 0.0
    %942 = vmatpush1.msra.mxu0 %v312
    %943 = vmatprep.subr.mxu0 0.0
    %944 = vmatpush1.msra.mxu0 %v313
    %945 = vmatprep.subr.mxu0 0.0
    %946 = vmatpush1.msra.mxu0 %v314
    %947 = vmatprep.subr.mxu0 0.0
    %948 = vmatpush1.msra.mxu0 %v315
    %949 = vmatprep.subr.mxu0 0.0
    %950 = vmatpush1.msra.mxu0 %v316
    %951 = vmatprep.subr.mxu0 0.0
    %952 = vmatpush1.msra.mxu0 %v317
    %953 = vmatprep.subr.mxu0 0.0
    %954 = vmatpush1.msra.mxu0 %v318
    %955 = vmatprep.subr.mxu0 0.0
    %956 = vmatpush1.msra.mxu0 %v319
    %957 = vmatprep.subr.mxu0 0.0
    %958 = vmatpush1.msra.mxu0 0.0
    %959 = vmatprep.subr.mxu0 0.0
    %960 = vmatpush1.msra.mxu0 0.0
    %961 = vmatprep.subr.mxu0 0.0
    %962 = vmatpush1.msra.mxu0 0.0
    %963 = vmatprep.subr.mxu0 0.0
    %964 = vmatpush1.msra.mxu0 0.0
    %965 = vmatprep.subr.mxu0 0.0
    %966 = vmatpush1.msra.mxu0 0.0
    %967 = vmatprep.subr.mxu0 0.0
    %968 = vmatpush1.msra.mxu0 0.0
    %969 = vmatprep.subr.mxu0 0.0
    %970 = vmatpush1.msra.mxu0 0.0
    %971 = vmatprep.subr.mxu0 0.0
    %972 = vmatpush1.msra.mxu0 0.0
    %973 = vmatprep.subr.mxu0 0.0
    %974 = vmatpush1.msra.mxu0 0.0
    %975 = vmatprep.subr.mxu0 0.0
    %976 = vmatpush1.msra.mxu0 0.0
    %977 = vmatprep.subr.mxu0 0.0
    %978 = vmatpush1.msra.mxu0 0.0
    %979 = vmatprep.subr.mxu0 0.0
    %980 = vmatpush1.msra.mxu0 0.0
    %981 = vmatprep.subr.mxu0 0.0
    %982 = vmatpush1.msra.mxu0 0.0
    %983 = vmatprep.subr.mxu0 0.0
    %984 = vmatpush1.msra.mxu0 0.0
    %985 = vmatprep.subr.mxu0 0.0
    %986 = vmatpush1.msra.mxu0 0.0
    %987 = vmatprep.subr.mxu0 0.0
    %988 = vmatpush1.msra.mxu0 0.0
    %989 = vmatprep.mubr.f32.mxu0 0.0
    %990 = vmatmul.mubr.f32.gmra.mrb[0].mxu0 %v923
    %v991 = vpop.f32.mrb[0].mxu0
    %v992 = vadd.f32 0.0, %v991
    %v993 = vpop.f32.mrb[0].mxu0
    %994 = vmatprep.mubr.f32.mxu0 0.0
    %995 = vmatmul.mubr.f32.gmra.mrb[0].mxu0 %v924
    %v996 = vpop.f32.mrb[0].mxu0
    %v997 = vadd.f32 0.0, %v996
    %v998 = vpop.f32.mrb[0].mxu0
    %999 = vdwg.mxu0
    %v1000 = vld [vmem:[#allocation4] sm:$0xff]
    %v1001 = vld [vmem:[#allocation4 + $0x8] sm:$0xff]
    %v1002 = vmul.f32 %v1000, 0.9
    %v1003 = vmul.f32 %v1001, 0.9
    %s1004 = scalar_lea.vmem [#allocation2], 80
    %v1005 = vld [vmem:[%s1004] sm:$0xff]
    %v1006 = vld [vmem:[%s1004 + $0x8] sm:$0xff]
    %v1007 = vadd.f32 %v1002, %v1005
    %v1008 = vadd.f32 %v1003, %v1006
    %v1009 = vadd.f32 %v1007, %v992
    %v1010 = vadd.f32 %v1008, %v997
    %v1011 = vld [vmem:[#allocation5] sm:$0xff]
    %v1012 = vld [vmem:[#allocation5 + $0x8] sm:$0xff]
    %v1013 = vmul.f32 %v1011, 0.9
    %v1014 = vmul.f32 %v1012, 0.9
    %v1015 = vadd.f32 %v1013, %v1009
    %v1016 = vadd.f32 %v1014, %v1010
    %v1017 = vmul.f32 %v923, 20.0
    %v1018 = vmul.f32 %v924, 20.0
    %v1019 = vsub.f32 %v1015, %v1017
    %v1020 = vsub.f32 %v1016, %v1018
    %vm1021 = vcmp.gt.f32.partialorder %v1019, 20.0
    %vm1022 = vcmp.gt.f32.partialorder %v1020, 20.0
    %v1023 = vsel %vm1021, 1, 0
    %v1024 = vsel %vm1022, 1, 0
    %v1025 = vcvt.s32.f32 %v1023
    %v1026 = vcvt.s32.f32 %v1024
    %1027 = vst [vmem:[#allocation4] sm:$0xff] %v1009
    %1028 = vst [vmem:[#allocation4 + $0x8] sm:$0xff] %v1010
    %1029 = vst [vmem:[#allocation5] sm:$0xff] %v1019
    %1030 = vst [vmem:[#allocation5 + $0x8] sm:$0xff] %v1020
    %1031 = vst [vmem:[#allocation3] sm:$0xff] %v1025
    %1032 = vst [vmem:[#allocation3 + $0x8] sm:$0xff] %v1026
    %v1033 = vpack.c.bf16 %v1026, %v1025
    %v1035 = vunpack.c.l.b16 %v1033
    %v1036 = vunpack.c.h.b16 %v1033
    %v1037 = vpack.c.b16 %v1035, %v1035
    %v1038 = vpack.c.b16 %v1036, %v1036
    %s1041 = scalar_lea.vmem [#allocation12], 40
    %1042 = vst [vmem:[%s1041] sm:$0xf] %v1037
    %1043 = vst [vmem:[%s1041 + $0x4] sm:$0xf] %v1038
    %v1044 = vld [vmem:[#allocation3] sm:$0xff]
    %v1045 = vld [vmem:[#allocation3 + $0x8] sm:$0xff]
    %1046 = vmatprep.subr.mxu0 0.0
    %1047 = vmatpush1.msra.mxu0 %v304
    %1048 = vmatprep.subr.mxu0 0.0
    %1049 = vmatpush1.msra.mxu0 %v305
    %1050 = vmatprep.subr.mxu0 0.0
    %1051 = vmatpush1.msra.mxu0 %v306
    %1052 = vmatprep.subr.mxu0 0.0
    %1053 = vmatpush1.msra.mxu0 %v307
    %1054 = vmatprep.subr.mxu0 0.0
    %1055 = vmatpush1.msra.mxu0 %v308
    %1056 = vmatprep.subr.mxu0 0.0
    %1057 = vmatpush1.msra.mxu0 %v309
    %1058 = vmatprep.subr.mxu0 0.0
    %1059 = vmatpush1.msra.mxu0 %v310
    %1060 = vmatprep.subr.mxu0 0.0
    %1061 = vmatpush1.msra.mxu0 %v311
    %1062 = vmatprep.subr.mxu0 0.0
    %1063 = vmatpush1.msra.mxu0 %v312
    %1064 = vmatprep.subr.mxu0 0.0
    %1065 = vmatpush1.msra.mxu0 %v313
    %1066 = vmatprep.subr.mxu0 0.0
    %1067 = vmatpush1.msra.mxu0 %v314
    %1068 = vmatprep.subr.mxu0 0.0
    %1069 = vmatpush1.msra.mxu0 %v315
    %1070 = vmatprep.subr.mxu0 0.0
    %1071 = vmatpush1.msra.mxu0 %v316
    %1072 = vmatprep.subr.mxu0 0.0
    %1073 = vmatpush1.msra.mxu0 %v317
    %1074 = vmatprep.subr.mxu0 0.0
    %1075 = vmatpush1.msra.mxu0 %v318
    %1076 = vmatprep.subr.mxu0 0.0
    %1077 = vmatpush1.msra.mxu0 %v319
    %1078 = vmatprep.subr.mxu0 0.0
    %1079 = vmatpush1.msra.mxu0 0.0
    %1080 = vmatprep.subr.mxu0 0.0
    %1081 = vmatpush1.msra.mxu0 0.0
    %1082 = vmatprep.subr.mxu0 0.0
    %1083 = vmatpush1.msra.mxu0 0.0
    %1084 = vmatprep.subr.mxu0 0.0
    %1085 = vmatpush1.msra.mxu0 0.0
    %1086 = vmatprep.subr.mxu0 0.0
    %1087 = vmatpush1.msra.mxu0 0.0
    %1088 = vmatprep.subr.mxu0 0.0
    %1089 = vmatpush1.msra.mxu0 0.0
    %1090 = vmatprep.subr.mxu0 0.0
    %1091 = vmatpush1.msra.mxu0 0.0
    %1092 = vmatprep.subr.mxu0 0.0
    %1093 = vmatpush1.msra.mxu0 0.0
    %1094 = vmatprep.subr.mxu0 0.0
    %1095 = vmatpush1.msra.mxu0 0.0
    %1096 = vmatprep.subr.mxu0 0.0
    %1097 = vmatpush1.msra.mxu0 0.0
    %1098 = vmatprep.subr.mxu0 0.0
    %1099 = vmatpush1.msra.mxu0 0.0
    %1100 = vmatprep.subr.mxu0 0.0
    %1101 = vmatpush1.msra.mxu0 0.0
    %1102 = vmatprep.subr.mxu0 0.0
    %1103 = vmatpush1.msra.mxu0 0.0
    %1104 = vmatprep.subr.mxu0 0.0
    %1105 = vmatpush1.msra.mxu0 0.0
    %1106 = vmatprep.subr.mxu0 0.0
    %1107 = vmatpush1.msra.mxu0 0.0
    %1108 = vmatprep.subr.mxu0 0.0
    %1109 = vmatpush1.msra.mxu0 0.0
    %1110 = vmatprep.mubr.f32.mxu0 0.0
    %1111 = vmatmul.mubr.f32.gmra.mrb[0].mxu0 %v1044
    %v1112 = vpop.f32.mrb[0].mxu0
    %v1113 = vadd.f32 0.0, %v1112
    %v1114 = vpop.f32.mrb[0].mxu0
    %1115 = vmatprep.mubr.f32.mxu0 0.0
    %1116 = vmatmul.mubr.f32.gmra.mrb[0].mxu0 %v1045
    %v1117 = vpop.f32.mrb[0].mxu0
    %v1118 = vadd.f32 0.0, %v1117
    %v1119 = vpop.f32.mrb[0].mxu0
    %1120 = vdwg.mxu0
    %v1121 = vld [vmem:[#allocation4] sm:$0xff]
    %v1122 = vld [vmem:[#allocation4 + $0x8] sm:$0xff]
    %v1123 = vmul.f32 %v1121, 0.9
    %v1124 = vmul.f32 %v1122, 0.9
    %s1125 = scalar_lea.vmem [#allocation2], 96
    %v1126 = vld [vmem:[%s1125] sm:$0xff]
    %v1127 = vld [vmem:[%s1125 + $0x8] sm:$0xff]
    %v1128 = vadd.f32 %v1123, %v1126
    %v1129 = vadd.f32 %v1124, %v1127
    %v1130 = vadd.f32 %v1128, %v1113
    %v1131 = vadd.f32 %v1129, %v1118
    %v1132 = vld [vmem:[#allocation5] sm:$0xff]
    %v1133 = vld [vmem:[#allocation5 + $0x8] sm:$0xff]
    %v1134 = vmul.f32 %v1132, 0.9
    %v1135 = vmul.f32 %v1133, 0.9
    %v1136 = vadd.f32 %v1134, %v1130
    %v1137 = vadd.f32 %v1135, %v1131
    %v1138 = vmul.f32 %v1044, 20.0
    %v1139 = vmul.f32 %v1045, 20.0
    %v1140 = vsub.f32 %v1136, %v1138
    %v1141 = vsub.f32 %v1137, %v1139
    %vm1142 = vcmp.gt.f32.partialorder %v1140, 20.0
    %vm1143 = vcmp.gt.f32.partialorder %v1141, 20.0
    %v1144 = vsel %vm1142, 1, 0
    %v1145 = vsel %vm1143, 1, 0
    %v1146 = vcvt.s32.f32 %v1144
    %v1147 = vcvt.s32.f32 %v1145
    %1148 = vst [vmem:[#allocation4] sm:$0xff] %v1130
    %1149 = vst [vmem:[#allocation4 + $0x8] sm:$0xff] %v1131
    %1150 = vst [vmem:[#allocation5] sm:$0xff] %v1140
    %1151 = vst [vmem:[#allocation5 + $0x8] sm:$0xff] %v1141
    %1152 = vst [vmem:[#allocation3] sm:$0xff] %v1146
    %1153 = vst [vmem:[#allocation3 + $0x8] sm:$0xff] %v1147
    %v1154 = vpack.c.bf16 %v1147, %v1146
    %v1156 = vunpack.c.l.b16 %v1154
    %v1157 = vunpack.c.h.b16 %v1154
    %v1158 = vpack.c.b16 %v1156, %v1156
    %v1159 = vpack.c.b16 %v1157, %v1157
    %s1162 = scalar_lea.vmem [#allocation12], 48
    %1163 = vst [vmem:[%s1162] sm:$0xf] %v1158
    %1164 = vst [vmem:[%s1162 + $0x4] sm:$0xf] %v1159
    %v1165 = vld [vmem:[#allocation3] sm:$0xff]
    %v1166 = vld [vmem:[#allocation3 + $0x8] sm:$0xff]
    %1167 = vmatprep.subr.mxu0 0.0
    %1168 = vmatpush1.msra.mxu0 %v304
    %1169 = vmatprep.subr.mxu0 0.0
    %1170 = vmatpush1.msra.mxu0 %v305
    %1171 = vmatprep.subr.mxu0 0.0
    %1172 = vmatpush1.msra.mxu0 %v306
    %1173 = vmatprep.subr.mxu0 0.0
    %1174 = vmatpush1.msra.mxu0 %v307
    %1175 = vmatprep.subr.mxu0 0.0
    %1176 = vmatpush1.msra.mxu0 %v308
    %1177 = vmatprep.subr.mxu0 0.0
    %1178 = vmatpush1.msra.mxu0 %v309
    %1179 = vmatprep.subr.mxu0 0.0
    %1180 = vmatpush1.msra.mxu0 %v310
    %1181 = vmatprep.subr.mxu0 0.0
    %1182 = vmatpush1.msra.mxu0 %v311
    %1183 = vmatprep.subr.mxu0 0.0
    %1184 = vmatpush1.msra.mxu0 %v312
    %1185 = vmatprep.subr.mxu0 0.0
    %1186 = vmatpush1.msra.mxu0 %v313
    %1187 = vmatprep.subr.mxu0 0.0
    %1188 = vmatpush1.msra.mxu0 %v314
    %1189 = vmatprep.subr.mxu0 0.0
    %1190 = vmatpush1.msra.mxu0 %v315
    %1191 = vmatprep.subr.mxu0 0.0
    %1192 = vmatpush1.msra.mxu0 %v316
    %1193 = vmatprep.subr.mxu0 0.0
    %1194 = vmatpush1.msra.mxu0 %v317
    %1195 = vmatprep.subr.mxu0 0.0
    %1196 = vmatpush1.msra.mxu0 %v318
    %1197 = vmatprep.subr.mxu0 0.0
    %1198 = vmatpush1.msra.mxu0 %v319
    %1199 = vmatprep.subr.mxu0 0.0
    %1200 = vmatpush1.msra.mxu0 0.0
    %1201 = vmatprep.subr.mxu0 0.0
    %1202 = vmatpush1.msra.mxu0 0.0
    %1203 = vmatprep.subr.mxu0 0.0
    %1204 = vmatpush1.msra.mxu0 0.0
    %1205 = vmatprep.subr.mxu0 0.0
    %1206 = vmatpush1.msra.mxu0 0.0
    %1207 = vmatprep.subr.mxu0 0.0
    %1208 = vmatpush1.msra.mxu0 0.0
    %1209 = vmatprep.subr.mxu0 0.0
    %1210 = vmatpush1.msra.mxu0 0.0
    %1211 = vmatprep.subr.mxu0 0.0
    %1212 = vmatpush1.msra.mxu0 0.0
    %1213 = vmatprep.subr.mxu0 0.0
    %1214 = vmatpush1.msra.mxu0 0.0
    %1215 = vmatprep.subr.mxu0 0.0
    %1216 = vmatpush1.msra.mxu0 0.0
    %1217 = vmatprep.subr.mxu0 0.0
    %1218 = vmatpush1.msra.mxu0 0.0
    %1219 = vmatprep.subr.mxu0 0.0
    %1220 = vmatpush1.msra.mxu0 0.0
    %1221 = vmatprep.subr.mxu0 0.0
    %1222 = vmatpush1.msra.mxu0 0.0
    %1223 = vmatprep.subr.mxu0 0.0
    %1224 = vmatpush1.msra.mxu0 0.0
    %1225 = vmatprep.subr.mxu0 0.0
    %1226 = vmatpush1.msra.mxu0 0.0
    %1227 = vmatprep.subr.mxu0 0.0
    %1228 = vmatpush1.msra.mxu0 0.0
    %1229 = vmatprep.subr.mxu0 0.0
    %1230 = vmatpush1.msra.mxu0 0.0
    %1231 = vmatprep.mubr.f32.mxu0 0.0
    %1232 = vmatmul.mubr.f32.gmra.mrb[0].mxu0 %v1165
    %v1233 = vpop.f32.mrb[0].mxu0
    %v1234 = vadd.f32 0.0, %v1233
    %v1235 = vpop.f32.mrb[0].mxu0
    %1236 = vmatprep.mubr.f32.mxu0 0.0
    %1237 = vmatmul.mubr.f32.gmra.mrb[0].mxu0 %v1166
    %v1238 = vpop.f32.mrb[0].mxu0
    %v1239 = vadd.f32 0.0, %v1238
    %v1240 = vpop.f32.mrb[0].mxu0
    %1241 = vdwg.mxu0
    %v1242 = vld [vmem:[#allocation4] sm:$0xff]
    %v1243 = vld [vmem:[#allocation4 + $0x8] sm:$0xff]
    %v1244 = vmul.f32 %v1242, 0.9
    %v1245 = vmul.f32 %v1243, 0.9
    %s1246 = scalar_lea.vmem [#allocation2], 112
    %v1247 = vld [vmem:[%s1246] sm:$0xff]
    %v1248 = vld [vmem:[%s1246 + $0x8] sm:$0xff]
    %v1249 = vadd.f32 %v1244, %v1247
    %v1250 = vadd.f32 %v1245, %v1248
    %v1251 = vadd.f32 %v1249, %v1234
    %v1252 = vadd.f32 %v1250, %v1239
    %v1253 = vld [vmem:[#allocation5] sm:$0xff]
    %v1254 = vld [vmem:[#allocation5 + $0x8] sm:$0xff]
    %v1255 = vmul.f32 %v1253, 0.9
    %v1256 = vmul.f32 %v1254, 0.9
    %v1257 = vadd.f32 %v1255, %v1251
    %v1258 = vadd.f32 %v1256, %v1252
    %v1259 = vmul.f32 %v1165, 20.0
    %v1260 = vmul.f32 %v1166, 20.0
    %v1261 = vsub.f32 %v1257, %v1259
    %v1262 = vsub.f32 %v1258, %v1260
    %vm1263 = vcmp.gt.f32.partialorder %v1261, 20.0
    %vm1264 = vcmp.gt.f32.partialorder %v1262, 20.0
    %v1265 = vsel %vm1263, 1, 0
    %v1266 = vsel %vm1264, 1, 0
    %v1267 = vcvt.s32.f32 %v1265
    %v1268 = vcvt.s32.f32 %v1266
    %1269 = vst [vmem:[#allocation4] sm:$0xff] %v1251
    %1270 = vst [vmem:[#allocation4 + $0x8] sm:$0xff] %v1252
    %1271 = vst [vmem:[#allocation5] sm:$0xff] %v1261
    %1272 = vst [vmem:[#allocation5 + $0x8] sm:$0xff] %v1262
    %1273 = vst [vmem:[#allocation3] sm:$0xff] %v1267
    %1274 = vst [vmem:[#allocation3 + $0x8] sm:$0xff] %v1268
    %v1275 = vpack.c.bf16 %v1268, %v1267
    %v1277 = vunpack.c.l.b16 %v1275
    %v1278 = vunpack.c.h.b16 %v1275
    %v1279 = vpack.c.b16 %v1277, %v1277
    %v1280 = vpack.c.b16 %v1278, %v1278
    %s1283 = scalar_lea.vmem [#allocation12], 56
    %1284 = vst [vmem:[%s1283] sm:$0xf] %v1279
    %1285 = vst [vmem:[%s1283 + $0x4] sm:$0xf] %v1280
    // Predicated region
    $region34: #{tpu_custom_call.1} parent=1 // pred_check
      _
    $region35: #{tpu_custom_call.1} parent=1 // pred_check_branch
      %1287 = sbr.rel (0) target = $region37
    $region36: #{tpu_custom_call.1} parent=1 // pred_region
      %s1289 = ssub.s32 1024, 1024
      %1290 = vsyncadd [#allocation8], %s1289
      %s1291 = sshll.u32 [#allocation12], 4
      %s1292 = int_to_ptr.vmem [resolvable:$true] %s1291
      %1297 = dma.vmem_to_hbm [thread:$0]  %s1292, 1024, %s4, [#allocation8], 64, 64, 4
    $region37: #{tpu_custom_call.1} parent=1 // pred_fallthru
      _
    // Predicated region
    $region38: #{tpu_custom_call.1} parent=1 // pred_check
      _
    $region39: #{tpu_custom_call.1} parent=1 // pred_check_branch
      %1299 = sbr.rel (0) target = $region41
    $region40: #{tpu_custom_call.1} parent=1 // pred_region
      %1300 = dma.done [#allocation8], 1024
    $region41: #{tpu_custom_call.1} parent=1 // pred_fallthru
      _
    %1301 = vsyncpa [#allocation7], 1
    %1302 = vsyncpa [#allocation10], 1
    %1303 = vsyncpa [#allocation8], 1

</llo_original>
